<compile_context>
chip_gen: v7x
topology: tpu7x:2x2x1
jax: 0.10.0
libtpu: 0.0.40
codegen_flags: <defaults>
</compile_context>

<pallas_src>
import jax
import jax.numpy as jnp
from jax import lax
from jax.experimental import pallas as pl
from jax.experimental.pallas import tpu as pltpu


def make_basic_block_kernel(H, W, Cin, Cout, stride, has_projection, cdtype):
    Hout = (H - 1) // stride + 1
    Wout = (W - 1) // stride + 1
    WCout = Wout * Cout

    def gather_rows(x2d, dh):
        # R[h, :] = x2d[h*stride + dh, :]  (zero row when the index is OOB).
        # Tiny 0/1 selection matmul -> no strided sublane reads for stride > 1.
        rows = lax.broadcasted_iota(jnp.int32, (Hout, H), 0)
        cols = lax.broadcasted_iota(jnp.int32, (Hout, H), 1)
        sel = (cols == rows * stride + dh).astype(jnp.float32)
        return jnp.dot(sel, x2d.astype(jnp.float32),
                       preferred_element_type=jnp.float32).astype(cdtype)

    def kernel(*refs):
        if has_projection:
            (x_ref, t1_ref, s1_ref, b1_ref, t2_ref, s2_ref, b2_ref,
             ts_ref, ss_ref, bs_ref, o_ref, acc_ref, h1_ref) = refs
        else:
            (x_ref, t1_ref, s1_ref, b1_ref, t2_ref, s2_ref, b2_ref,
             o_ref, acc_ref, h1_ref) = refs

        # -------- conv1 (3x3, stride, pad=1): 3 Toeplitz matmuls --------
        if stride == 1:
            x_mid = x_ref[0]                                   # (H, W*Cin)
            acc_ref[...] = jnp.dot(x_mid, t1_ref[1],
                                   preferred_element_type=jnp.float32)
            # H-direction halo: the edge taps only feed the interior rows.
            acc_ref[1:Hout, :] += jnp.dot(x_ref[0, 0:H - 1, :], t1_ref[0],
                                          preferred_element_type=jnp.float32)
            acc_ref[0:Hout - 1, :] += jnp.dot(x_ref[0, 1:H, :], t1_ref[2],
                                              preferred_element_type=jnp.float32)
            sc_rows = x_mid
        else:
            x2d = x_ref[0]
            r_m1 = gather_rows(x2d, -1)
            r_0 = gather_rows(x2d, 0)
            r_p1 = gather_rows(x2d, 1)
            acc_ref[...] = (
                jnp.dot(r_m1, t1_ref[0], preferred_element_type=jnp.float32)
                + jnp.dot(r_0, t1_ref[1], preferred_element_type=jnp.float32)
                + jnp.dot(r_p1, t1_ref[2], preferred_element_type=jnp.float32))
            sc_rows = r_0

        # Folded BN1 + ReLU (f32 elementwise tail), stash lane-dense h1 slab.
        h1_ref[...] = jnp.maximum(acc_ref[...] * s1_ref[...] + b1_ref[...],
                                  0.0).astype(h1_ref.dtype)

        # -------- conv2 (3x3, stride=1, pad=1) on (Hout, Wout*Cout) --------
        acc_ref[...] = jnp.dot(h1_ref[...], t2_ref[1],
                               preferred_element_type=jnp.float32)
        acc_ref[1:Hout, :] += jnp.dot(h1_ref[0:Hout - 1, :], t2_ref[0],
                                      preferred_element_type=jnp.float32)
        acc_ref[0:Hout - 1, :] += jnp.dot(h1_ref[1:Hout, :], t2_ref[2],
                                          preferred_element_type=jnp.float32)
        out2 = acc_ref[...] * s2_ref[...] + b2_ref[...]

        # -------- shortcut + final ReLU --------
        if has_projection:
            sc = jnp.dot(sc_rows, ts_ref[...],
                         preferred_element_type=jnp.float32)
            sc = sc * ss_ref[...] + bs_ref[...]
        else:
            # identity: stride == 1 and Cin == Cout, layouts match exactly.
            sc = sc_rows.astype(jnp.float32)

        o_ref[0] = jnp.maximum(out2 + sc, 0.0)

    return kernel


def build_toeplitz(w_hwio, w_in, w_out, stride, pad, dtype):
    """Per-kernel-row block-Toeplitz matrices for the W direction of a conv.

    T[kh, wi*Ci + ci, wo*Co + co] = w[kh, kw, ci, co]  where wi == wo*stride + kw - pad.
    Out-of-range wi simply have no entry, so zero padding along W is built in.
    """
    KH, KW, Ci, Co = w_hwio.shape
    wi = jnp.arange(w_in)[:, None, None]
    wo = jnp.arange(w_out)[None, :, None]
    kw = jnp.arange(KW)[None, None, :]
    sel = (wi == wo * stride + kw - pad).astype(w_hwio.dtype)   # (w_in, w_out, KW)
    t = jnp.einsum("wok,hkcd->hwcod", sel, w_hwio)              # (KH, w_in, Ci, w_out, Co)
    return t.reshape(KH, w_in * Ci, w_out * Co).astype(dtype)


def basic_block_forward(x_nhwc, params, stride=1, compute_dtype=jnp.bfloat16):
    N, H, W, Cin = x_nhwc.shape
    Cout = params["w1"].shape[-1]
    Hout = (H - 1) // stride + 1
    Wout = (W - 1) // stride + 1
    WCin, WCout = W * Cin, Wout * Cout
    has_projection = (stride != 1) or (Cin != Cout)

    # Lane-dense layout: merge (W, C) onto the lane dim.  Contiguous
    # trailing-dim merge -> no padded HBM copy of the input; bf16 halves the
    # per-step activation DMA.
    x2d = x_nhwc.reshape(N, H, WCin).astype(compute_dtype)

    t1 = build_toeplitz(params["w1"], W, Wout, stride, 1, compute_dtype)
    t2 = build_toeplitz(params["w2"], Wout, Wout, 1, 1, compute_dtype)

    def lane_vec(v):  # per-channel (Cout,) -> lane-dense (1, Wout*Cout) f32
        return jnp.tile(v.astype(jnp.float32), Wout).reshape(1, WCout)

    s1, b1 = lane_vec(params["s1"]), lane_vec(params["b1"])
    s2, b2 = lane_vec(params["s2"]), lane_vec(params["b2"])

    vec_spec = pl.BlockSpec((1, WCout), lambda n: (0, 0))
    in_specs = [
        pl.BlockSpec((1, H, WCin), lambda n: (n, 0, 0)),
        pl.BlockSpec((3, WCin, WCout), lambda n: (0, 0, 0)),
        vec_spec, vec_spec,
        pl.BlockSpec((3, WCout, WCout), lambda n: (0, 0, 0)),
        vec_spec, vec_spec,
    ]
    args = [x2d, t1, s1, b1, t2, s2, b2]
    if has_projection:
        ts = build_toeplitz(params["ws"], W, Wout, stride, 0, compute_dtype)[0]
        ss, bs = lane_vec(params["ss"]), lane_vec(params["bs"])
        in_specs += [pl.BlockSpec((WCin, WCout), lambda n: (0, 0)),
                     vec_spec, vec_spec]
        args += [ts, ss, bs]

    kernel = make_basic_block_kernel(H, W, Cin, Cout, stride, has_projection,
                                     compute_dtype)

    out2d = pl.pallas_call(
        kernel,
        out_shape=jax.ShapeDtypeStruct((N, Hout, WCout), jnp.float32),
        grid_spec=pltpu.PrefetchScalarGridSpec(
            num_scalar_prefetch=0,
            grid=(N,),
            in_specs=in_specs,
            out_specs=pl.BlockSpec((1, Hout, WCout), lambda n: (n, 0, 0)),
            scratch_shapes=[
                pltpu.VMEM((Hout, WCout), jnp.float32),     # conv accumulator
                pltpu.VMEM((Hout, WCout), compute_dtype),   # h1 slab for conv2
            ],
        ),
        compiler_params=pltpu.CompilerParams(
            dimension_semantics=("parallel",),
            vmem_limit_bytes=32 * 1024 * 1024,
        ),
    )(*args)
    return out2d.reshape(N, Hout, Wout, Cout)


def init_params(key, Cin, Cout, stride, eps=1e-5):
    ks = jax.random.split(key, 3)
    # Conv weights in HWIO; BatchNorm in eval mode folded to scale/bias.
    w1 = jax.random.normal(ks[0], (3, 3, Cin, Cout), jnp.float32) * 0.1
    w2 = jax.random.normal(ks[1], (3, 3, Cout, Cout), jnp.float32) * 0.1

    def bn_fold(c, off):
        gamma = 1.0 + 0.1 * jnp.arange(c, dtype=jnp.float32) + 0.01 * off
        beta = 0.05 * jnp.arange(c, dtype=jnp.float32) - 0.02 * off
        mean = 0.01 * jnp.arange(c, dtype=jnp.float32)
        var = 1.0 + 0.02 * jnp.arange(c, dtype=jnp.float32)
        scale = gamma / jnp.sqrt(var + eps)
        return scale, beta - mean * scale

    s1, b1 = bn_fold(Cout, 0)
    s2, b2 = bn_fold(Cout, 1)
    p = dict(w1=w1, w2=w2, s1=s1, b1=b1, s2=s2, b2=b2)
    if (stride != 1) or (Cin != Cout):
        p["ws"] = jax.random.normal(ks[2], (1, 1, Cin, Cout), jnp.float32) * 0.1
        p["ss"], p["bs"] = bn_fold(Cout, 2)
    return p


def ref_forward(x_nhwc, p, stride, compute_dtype):
    xc = x_nhwc.astype(compute_dtype)

    def conv(x, w, s, pad):
        return lax.conv_general_dilated(
            x.astype(compute_dtype), w.astype(compute_dtype), (s, s),
            ((pad, pad), (pad, pad)),
            dimension_numbers=("NHWC", "HWIO", "NHWC"),
            preferred_element_type=jnp.float32)

    h = jnp.maximum(conv(xc, p["w1"], stride, 1) * p["s1"] + p["b1"], 0.0)
    o = conv(h, p["w2"], 1, 1) * p["s2"] + p["b2"]
    if "ws" in p:
        sc = conv(xc, p["ws"], stride, 0) * p["ss"] + p["bs"]
    else:
        sc = xc.astype(jnp.float32)
    return jnp.maximum(o + sc, 0.0)


if __name__ == "__main__":
    root = jax.random.PRNGKey(0)

    # (N, Cin, H, W, Cout, stride): projection shortcut, identity shortcut
    # (compiled out of the kernel), and a stride-2 block.
    configs = [
        (2, 4, 16, 16, 8, 1),
        (2, 8, 16, 16, 8, 1),
        (2, 4, 16, 16, 8, 2),
    ]
    for i, (N, Cin, H, W, Cout, stride) in enumerate(configs):
        kx, kp = jax.random.split(jax.random.fold_in(root, i))
        # Module-native NCHW input; transpose to NHWC (channels on lanes).
        x_nchw = jax.random.normal(kx, (N, Cin, H, W), jnp.float32)
        x_nhwc = jnp.transpose(x_nchw, (0, 2, 3, 1))
        params = init_params(kp, Cin, Cout, stride)

        out = jax.block_until_ready(basic_block_forward(x_nhwc, params, stride))
        ref = ref_forward(x_nhwc, params, stride, jnp.bfloat16)
        err = float(jnp.max(jnp.abs(out - ref)))
        assert jnp.allclose(out, ref, rtol=2e-2, atol=2e-2), (
            f"config {i} ({Cin}->{Cout}, stride={stride}): max abs err = {err}")

    print("KERNEL_OK")
</pallas_src>

<mosaic_0001>
module attributes {stable_mosaic.version = 11 : i64} {
  func.func @kernel(%arg0: i32, %arg1: memref<1x16x64xbf16, #tpu.memory_space<vmem>>, %arg2: memref<3x64x128xbf16, #tpu.memory_space<vmem>>, %arg3: memref<1x128xf32, #tpu.memory_space<vmem>>, %arg4: memref<1x128xf32, #tpu.memory_space<vmem>>, %arg5: memref<3x128x128xbf16, #tpu.memory_space<vmem>>, %arg6: memref<1x128xf32, #tpu.memory_space<vmem>>, %arg7: memref<1x128xf32, #tpu.memory_space<vmem>>, %arg8: memref<64x128xbf16, #tpu.memory_space<vmem>>, %arg9: memref<1x128xf32, #tpu.memory_space<vmem>>, %arg10: memref<1x128xf32, #tpu.memory_space<vmem>>, %arg11: memref<1x16x128xf32, #tpu.memory_space<vmem>>, %arg12: memref<16x128xf32, #tpu.memory_space<vmem>>, %arg13: memref<16x128xbf16, #tpu.memory_space<vmem>>) attributes {dimension_semantics = [#tpu.dimension_semantics<parallel>], iteration_bounds = array<i64: 2>, scalar_prefetch = 0 : i64, scratch_operands = 2 : i64, tpu.core_type = #tpu.core_type<tc>, window_params = [{transform_indices = @transform_0, window_bounds = array<i64: 1, 16, 64>}, {pipeline_mode = #tpu.pipeline_mode<synchronous>, transform_indices = @transform_1, window_bounds = array<i64: 3, 64, 128>}, {pipeline_mode = #tpu.pipeline_mode<synchronous>, transform_indices = @transform_2, window_bounds = array<i64: 1, 128>}, {pipeline_mode = #tpu.pipeline_mode<synchronous>, transform_indices = @transform_3, window_bounds = array<i64: 1, 128>}, {pipeline_mode = #tpu.pipeline_mode<synchronous>, transform_indices = @transform_4, window_bounds = array<i64: 3, 128, 128>}, {pipeline_mode = #tpu.pipeline_mode<synchronous>, transform_indices = @transform_5, window_bounds = array<i64: 1, 128>}, {pipeline_mode = #tpu.pipeline_mode<synchronous>, transform_indices = @transform_6, window_bounds = array<i64: 1, 128>}, {pipeline_mode = #tpu.pipeline_mode<synchronous>, transform_indices = @transform_7, window_bounds = array<i64: 64, 128>}, {pipeline_mode = #tpu.pipeline_mode<synchronous>, transform_indices = @transform_8, window_bounds = array<i64: 1, 128>}, {pipeline_mode = #tpu.pipeline_mode<synchronous>, transform_indices = @transform_9, window_bounds = array<i64: 1, 128>}, {transform_indices = @transform_10, window_bounds = array<i64: 1, 16, 128>}]} {
    %c0 = arith.constant 0 : index
    %c0_0 = arith.constant 0 : index
    %c0_1 = arith.constant 0 : index
    %0 = vector.load %arg1[%c0, %c0_0, %c0_1] : memref<1x16x64xbf16, #tpu.memory_space<vmem>>, vector<1x16x64xbf16>
    %1 = vector.shape_cast %0 : vector<1x16x64xbf16> to vector<16x64xbf16>
    %c1 = arith.constant 1 : index
    %c0_2 = arith.constant 0 : index
    %c0_3 = arith.constant 0 : index
    %2 = vector.load %arg2[%c1, %c0_2, %c0_3] : memref<3x64x128xbf16, #tpu.memory_space<vmem>>, vector<1x64x128xbf16>
    %3 = vector.shape_cast %2 : vector<1x64x128xbf16> to vector<64x128xbf16>
    %cst = arith.constant dense<0.000000e+00> : vector<16x128xf32>
    %4 = tpu.matmul %1, %3, %cst {dimension_numbers = #tpu.dot_dimension_numbers<[1], [0], [0], [1], [0, 0, 1, 1], [], []>} : vector<16x64xbf16>, vector<64x128xbf16>, vector<16x128xf32> -> vector<16x128xf32>
    %c0_4 = arith.constant 0 : index
    %c0_5 = arith.constant 0 : index
    %5 = vector.load %arg12[%c0_4, %c0_5] : memref<16x128xf32, #tpu.memory_space<vmem>>, vector<16x128xf32>
    tpu.vector_store %arg12[%c0_4, %c0_5], %4 {strides = array<i32>} : memref<16x128xf32, #tpu.memory_space<vmem>>, vector<16x128xf32>,
    %c1_6 = arith.constant 1 : index
    %c0_7 = arith.constant 0 : index
    %6 = vector.load %arg12[%c1_6, %c0_7] : memref<16x128xf32, #tpu.memory_space<vmem>>, vector<15x128xf32>
    %c0_8 = arith.constant 0 : index
    %c0_9 = arith.constant 0 : index
    %c0_10 = arith.constant 0 : index
    %7 = vector.load %arg1[%c0_8, %c0_9, %c0_10] : memref<1x16x64xbf16, #tpu.memory_space<vmem>>, vector<1x15x64xbf16>
    %8 = vector.shape_cast %7 : vector<1x15x64xbf16> to vector<15x64xbf16>
    %c0_11 = arith.constant 0 : index
    %c0_12 = arith.constant 0 : index
    %c0_13 = arith.constant 0 : index
    %9 = vector.load %arg2[%c0_11, %c0_12, %c0_13] : memref<3x64x128xbf16, #tpu.memory_space<vmem>>, vector<1x64x128xbf16>
    %10 = vector.shape_cast %9 : vector<1x64x128xbf16> to vector<64x128xbf16>
    %cst_14 = arith.constant dense<0.000000e+00> : vector<15x128xf32>
    %11 = tpu.matmul %8, %10, %cst_14 {dimension_numbers = #tpu.dot_dimension_numbers<[1], [0], [0], [1], [0, 0, 1, 1], [], []>} : vector<15x64xbf16>, vector<64x128xbf16>, vector<15x128xf32> -> vector<15x128xf32>
    %12 = arith.addf %6, %11 : vector<15x128xf32>
    %c1_15 = arith.constant 1 : index
    %c0_16 = arith.constant 0 : index
    %13 = vector.load %arg12[%c1_15, %c0_16] : memref<16x128xf32, #tpu.memory_space<vmem>>, vector<15x128xf32>
    tpu.vector_store %arg12[%c1_15, %c0_16], %12 {strides = array<i32>} : memref<16x128xf32, #tpu.memory_space<vmem>>, vector<15x128xf32>,
    %c0_17 = arith.constant 0 : index
    %c0_18 = arith.constant 0 : index
    %14 = vector.load %arg12[%c0_17, %c0_18] : memref<16x128xf32, #tpu.memory_space<vmem>>, vector<15x128xf32>
    %c0_19 = arith.constant 0 : index
    %c1_20 = arith.constant 1 : index
    %c0_21 = arith.constant 0 : index
    %15 = vector.load %arg1[%c0_19, %c1_20, %c0_21] : memref<1x16x64xbf16, #tpu.memory_space<vmem>>, vector<1x15x64xbf16>
    %16 = vector.shape_cast %15 : vector<1x15x64xbf16> to vector<15x64xbf16>
    %c2 = arith.constant 2 : index
    %c0_22 = arith.constant 0 : index
    %c0_23 = arith.constant 0 : index
    %17 = vector.load %arg2[%c2, %c0_22, %c0_23] : memref<3x64x128xbf16, #tpu.memory_space<vmem>>, vector<1x64x128xbf16>
    %18 = vector.shape_cast %17 : vector<1x64x128xbf16> to vector<64x128xbf16>
    %cst_24 = arith.constant dense<0.000000e+00> : vector<15x128xf32>
    %19 = tpu.matmul %16, %18, %cst_24 {dimension_numbers = #tpu.dot_dimension_numbers<[1], [0], [0], [1], [0, 0, 1, 1], [], []>} : vector<15x64xbf16>, vector<64x128xbf16>, vector<15x128xf32> -> vector<15x128xf32>
    %20 = arith.addf %14, %19 : vector<15x128xf32>
    %c0_25 = arith.constant 0 : index
    %c0_26 = arith.constant 0 : index
    %21 = vector.load %arg12[%c0_25, %c0_26] : memref<16x128xf32, #tpu.memory_space<vmem>>, vector<15x128xf32>
    tpu.vector_store %arg12[%c0_25, %c0_26], %20 {strides = array<i32>} : memref<16x128xf32, #tpu.memory_space<vmem>>, vector<15x128xf32>,
    %c0_27 = arith.constant 0 : index
    %c0_28 = arith.constant 0 : index
    %22 = vector.load %arg12[%c0_27, %c0_28] : memref<16x128xf32, #tpu.memory_space<vmem>>, vector<16x128xf32>
    %c0_29 = arith.constant 0 : index
    %c0_30 = arith.constant 0 : index
    %23 = vector.load %arg3[%c0_29, %c0_30] : memref<1x128xf32, #tpu.memory_space<vmem>>, vector<1x128xf32>
    %24 = vector.broadcast %23 : vector<1x128xf32> to vector<16x128xf32>
    %25 = arith.mulf %22, %24 : vector<16x128xf32>
    %c0_31 = arith.constant 0 : index
    %c0_32 = arith.constant 0 : index
    %26 = vector.load %arg4[%c0_31, %c0_32] : memref<1x128xf32, #tpu.memory_space<vmem>>, vector<1x128xf32>
    %27 = vector.broadcast %26 : vector<1x128xf32> to vector<16x128xf32>
    %28 = arith.addf %25, %27 : vector<16x128xf32>
    %cst_33 = arith.constant 0.000000e+00 : f32
    %29 = vector.broadcast %cst_33 : f32 to vector<16x128xf32>
    %30 = arith.maximumf %28, %29 : vector<16x128xf32>
    %31 = arith.truncf %30 : vector<16x128xf32> to vector<16x128xbf16>
    %c0_34 = arith.constant 0 : index
    %c0_35 = arith.constant 0 : index
    %32 = vector.load %arg13[%c0_34, %c0_35] : memref<16x128xbf16, #tpu.memory_space<vmem>>, vector<16x128xbf16>
    tpu.vector_store %arg13[%c0_34, %c0_35], %31 {strides = array<i32>} : memref<16x128xbf16, #tpu.memory_space<vmem>>, vector<16x128xbf16>,
    %c0_36 = arith.constant 0 : index
    %c0_37 = arith.constant 0 : index
    %33 = vector.load %arg13[%c0_36, %c0_37] : memref<16x128xbf16, #tpu.memory_space<vmem>>, vector<16x128xbf16>
    %c1_38 = arith.constant 1 : index
    %c0_39 = arith.constant 0 : index
    %c0_40 = arith.constant 0 : index
    %34 = vector.load %arg5[%c1_38, %c0_39, %c0_40] : memref<3x128x128xbf16, #tpu.memory_space<vmem>>, vector<1x128x128xbf16>
    %35 = vector.shape_cast %34 : vector<1x128x128xbf16> to vector<128x128xbf16>
    %cst_41 = arith.constant dense<0.000000e+00> : vector<16x128xf32>
    %36 = tpu.matmul %33, %35, %cst_41 {dimension_numbers = #tpu.dot_dimension_numbers<[1], [0], [0], [1], [0, 0, 1, 1], [], []>} : vector<16x128xbf16>, vector<128x128xbf16>, vector<16x128xf32> -> vector<16x128xf32>
    %c0_42 = arith.constant 0 : index
    %c0_43 = arith.constant 0 : index
    %37 = vector.load %arg12[%c0_42, %c0_43] : memref<16x128xf32, #tpu.memory_space<vmem>>, vector<16x128xf32>
    tpu.vector_store %arg12[%c0_42, %c0_43], %36 {strides = array<i32>} : memref<16x128xf32, #tpu.memory_space<vmem>>, vector<16x128xf32>,
    %c1_44 = arith.constant 1 : index
    %c0_45 = arith.constant 0 : index
    %38 = vector.load %arg12[%c1_44, %c0_45] : memref<16x128xf32, #tpu.memory_space<vmem>>, vector<15x128xf32>
    %c0_46 = arith.constant 0 : index
    %c0_47 = arith.constant 0 : index
    %39 = vector.load %arg13[%c0_46, %c0_47] : memref<16x128xbf16, #tpu.memory_space<vmem>>, vector<15x128xbf16>
    %c0_48 = arith.constant 0 : index
    %c0_49 = arith.constant 0 : index
    %c0_50 = arith.constant 0 : index
    %40 = vector.load %arg5[%c0_48, %c0_49, %c0_50] : memref<3x128x128xbf16, #tpu.memory_space<vmem>>, vector<1x128x128xbf16>
    %41 = vector.shape_cast %40 : vector<1x128x128xbf16> to vector<128x128xbf16>
    %cst_51 = arith.constant dense<0.000000e+00> : vector<15x128xf32>
    %42 = tpu.matmul %39, %41, %cst_51 {dimension_numbers = #tpu.dot_dimension_numbers<[1], [0], [0], [1], [0, 0, 1, 1], [], []>} : vector<15x128xbf16>, vector<128x128xbf16>, vector<15x128xf32> -> vector<15x128xf32>
    %43 = arith.addf %38, %42 : vector<15x128xf32>
    %c1_52 = arith.constant 1 : index
    %c0_53 = arith.constant 0 : index
    %44 = vector.load %arg12[%c1_52, %c0_53] : memref<16x128xf32, #tpu.memory_space<vmem>>, vector<15x128xf32>
    tpu.vector_store %arg12[%c1_52, %c0_53], %43 {strides = array<i32>} : memref<16x128xf32, #tpu.memory_space<vmem>>, vector<15x128xf32>,
    %c0_54 = arith.constant 0 : index
    %c0_55 = arith.constant 0 : index
    %45 = vector.load %arg12[%c0_54, %c0_55] : memref<16x128xf32, #tpu.memory_space<vmem>>, vector<15x128xf32>
    %c1_56 = arith.constant 1 : index
    %c0_57 = arith.constant 0 : index
    %46 = vector.load %arg13[%c1_56, %c0_57] : memref<16x128xbf16, #tpu.memory_space<vmem>>, vector<15x128xbf16>
    %c2_58 = arith.constant 2 : index
    %c0_59 = arith.constant 0 : index
    %c0_60 = arith.constant 0 : index
    %47 = vector.load %arg5[%c2_58, %c0_59, %c0_60] : memref<3x128x128xbf16, #tpu.memory_space<vmem>>, vector<1x128x128xbf16>
    %48 = vector.shape_cast %47 : vector<1x128x128xbf16> to vector<128x128xbf16>
    %cst_61 = arith.constant dense<0.000000e+00> : vector<15x128xf32>
    %49 = tpu.matmul %46, %48, %cst_61 {dimension_numbers = #tpu.dot_dimension_numbers<[1], [0], [0], [1], [0, 0, 1, 1], [], []>} : vector<15x128xbf16>, vector<128x128xbf16>, vector<15x128xf32> -> vector<15x128xf32>
    %50 = arith.addf %45, %49 : vector<15x128xf32>
    %c0_62 = arith.constant 0 : index
    %c0_63 = arith.constant 0 : index
    %51 = vector.load %arg12[%c0_62, %c0_63] : memref<16x128xf32, #tpu.memory_space<vmem>>, vector<15x128xf32>
    tpu.vector_store %arg12[%c0_62, %c0_63], %50 {strides = array<i32>} : memref<16x128xf32, #tpu.memory_space<vmem>>, vector<15x128xf32>,
    %c0_64 = arith.constant 0 : index
    %c0_65 = arith.constant 0 : index
    %52 = vector.load %arg12[%c0_64, %c0_65] : memref<16x128xf32, #tpu.memory_space<vmem>>, vector<16x128xf32>
    %c0_66 = arith.constant 0 : index
    %c0_67 = arith.constant 0 : index
    %53 = vector.load %arg6[%c0_66, %c0_67] : memref<1x128xf32, #tpu.memory_space<vmem>>, vector<1x128xf32>
    %54 = vector.broadcast %53 : vector<1x128xf32> to vector<16x128xf32>
    %55 = arith.mulf %52, %54 : vector<16x128xf32>
    %c0_68 = arith.constant 0 : index
    %c0_69 = arith.constant 0 : index
    %56 = vector.load %arg7[%c0_68, %c0_69] : memref<1x128xf32, #tpu.memory_space<vmem>>, vector<1x128xf32>
    %57 = vector.broadcast %56 : vector<1x128xf32> to vector<16x128xf32>
    %58 = arith.addf %55, %57 : vector<16x128xf32>
    %c0_70 = arith.constant 0 : index
    %c0_71 = arith.constant 0 : index
    %59 = vector.load %arg8[%c0_70, %c0_71] : memref<64x128xbf16, #tpu.memory_space<vmem>>, vector<64x128xbf16>
    %cst_72 = arith.constant dense<0.000000e+00> : vector<16x128xf32>
    %60 = tpu.matmul %1, %59, %cst_72 {dimension_numbers = #tpu.dot_dimension_numbers<[1], [0], [0], [1], [0, 0, 1, 1], [], []>} : vector<16x64xbf16>, vector<64x128xbf16>, vector<16x128xf32> -> vector<16x128xf32>
    %c0_73 = arith.constant 0 : index
    %c0_74 = arith.constant 0 : index
    %61 = vector.load %arg9[%c0_73, %c0_74] : memref<1x128xf32, #tpu.memory_space<vmem>>, vector<1x128xf32>
    %62 = vector.broadcast %61 : vector<1x128xf32> to vector<16x128xf32>
    %63 = arith.mulf %60, %62 : vector<16x128xf32>
    %c0_75 = arith.constant 0 : index
    %c0_76 = arith.constant 0 : index
    %64 = vector.load %arg10[%c0_75, %c0_76] : memref<1x128xf32, #tpu.memory_space<vmem>>, vector<1x128xf32>
    %65 = vector.broadcast %64 : vector<1x128xf32> to vector<16x128xf32>
    %66 = arith.addf %63, %65 : vector<16x128xf32>
    %67 = arith.addf %58, %66 : vector<16x128xf32>
    %cst_77 = arith.constant 0.000000e+00 : f32
    %68 = vector.broadcast %cst_77 : f32 to vector<16x128xf32>
    %69 = arith.maximumf %67, %68 : vector<16x128xf32>
    %c0_78 = arith.constant 0 : index
    %c0_79 = arith.constant 0 : index
    %c0_80 = arith.constant 0 : index
    %70 = vector.load %arg11[%c0_78, %c0_79, %c0_80] : memref<1x16x128xf32, #tpu.memory_space<vmem>>, vector<1x16x128xf32>
    %71 = vector.shape_cast %70 : vector<1x16x128xf32> to vector<16x128xf32>
    %72 = vector.shape_cast %69 : vector<16x128xf32> to vector<1x16x128xf32>
    tpu.vector_store %arg11[%c0_78, %c0_79, %c0_80], %72 {strides = array<i32>} : memref<1x16x128xf32, #tpu.memory_space<vmem>>, vector<1x16x128xf32>,
    return
  }
  func.func @transform_0(%arg0: i32) -> (i32, i32, i32) {
    %c0_i32 = arith.constant 0 : i32
    %c0_i32_0 = arith.constant 0 : i32
    %c0_i32_1 = arith.constant 0 : i32
    return %arg0, %c0_i32, %c0_i32_0 : i32, i32, i32
  }
  func.func @transform_1(%arg0: i32) -> (i32, i32, i32) {
    %c0_i32 = arith.constant 0 : i32
    %c0_i32_0 = arith.constant 0 : i32
    %c0_i32_1 = arith.constant 0 : i32
    %c0_i32_2 = arith.constant 0 : i32
    return %c0_i32, %c0_i32_0, %c0_i32_1 : i32, i32, i32
  }
  func.func @transform_2(%arg0: i32) -> (i32, i32) {
    %c0_i32 = arith.constant 0 : i32
    %c0_i32_0 = arith.constant 0 : i32
    %c0_i32_1 = arith.constant 0 : i32
    return %c0_i32, %c0_i32_0 : i32, i32
  }
  func.func @transform_3(%arg0: i32) -> (i32, i32) {
    %c0_i32 = arith.constant 0 : i32
    %c0_i32_0 = arith.constant 0 : i32
    %c0_i32_1 = arith.constant 0 : i32
    return %c0_i32, %c0_i32_0 : i32, i32
  }
  func.func @transform_4(%arg0: i32) -> (i32, i32, i32) {
    %c0_i32 = arith.constant 0 : i32
    %c0_i32_0 = arith.constant 0 : i32
    %c0_i32_1 = arith.constant 0 : i32
    %c0_i32_2 = arith.constant 0 : i32
    return %c0_i32, %c0_i32_0, %c0_i32_1 : i32, i32, i32
  }
  func.func @transform_5(%arg0: i32) -> (i32, i32) {
    %c0_i32 = arith.constant 0 : i32
    %c0_i32_0 = arith.constant 0 : i32
    %c0_i32_1 = arith.constant 0 : i32
    return %c0_i32, %c0_i32_0 : i32, i32
  }
  func.func @transform_6(%arg0: i32) -> (i32, i32) {
    %c0_i32 = arith.constant 0 : i32
    %c0_i32_0 = arith.constant 0 : i32
    %c0_i32_1 = arith.constant 0 : i32
    return %c0_i32, %c0_i32_0 : i32, i32
  }
  func.func @transform_7(%arg0: i32) -> (i32, i32) {
    %c0_i32 = arith.constant 0 : i32
    %c0_i32_0 = arith.constant 0 : i32
    %c0_i32_1 = arith.constant 0 : i32
    return %c0_i32, %c0_i32_0 : i32, i32
  }
  func.func @transform_8(%arg0: i32) -> (i32, i32) {
    %c0_i32 = arith.constant 0 : i32
    %c0_i32_0 = arith.constant 0 : i32
    %c0_i32_1 = arith.constant 0 : i32
    return %c0_i32, %c0_i32_0 : i32, i32
  }
  func.func @transform_9(%arg0: i32) -> (i32, i32) {
    %c0_i32 = arith.constant 0 : i32
    %c0_i32_0 = arith.constant 0 : i32
    %c0_i32_1 = arith.constant 0 : i32
    return %c0_i32, %c0_i32_0 : i32, i32
  }
  func.func @transform_10(%arg0: i32) -> (i32, i32, i32) {
    %c0_i32 = arith.constant 0 : i32
    %c0_i32_0 = arith.constant 0 : i32
    %c0_i32_1 = arith.constant 0 : i32
    return %arg0, %c0_i32, %c0_i32_0 : i32, i32, i32
  }
}

</mosaic_0001>

<llo_original>
// kernel: tpu_custom_call.1
$region0: #{tpu_custom_call.1}
  #allocation0 [shape = 'u32[]', space=smem, size = 0x4, offset = 0x4, fixed_abs, tag = 'smem constant byte address 0x4 - core index']
  #allocation1 [shape = 'u32[144,128]{1,0:T(1,128)}', space=vmem, size = 0x12000, scoped, tag = 'internal scratch']
  #allocation2 [shape = 'f32[16,128]{1,0:T(8,128)}', space=vmem, size = 0x2000, scoped, tag = 'scratch operand']
  #allocation3 [shape = 'bf16[16,128]{1,0:T(16,128)(2,1)}', space=vmem, size = 0x1000, scoped, tag = 'scratch operand']
  %s0 = inlined_call_operand.hbm [shape: bf16[2,16,64], index: 0, kind: input, shape index: {}]
  %s1 = inlined_call_operand.hbm [shape: bf16[3,64,128], index: 1, kind: input, shape index: {}]
  %s2 = inlined_call_operand.vmem [shape: f32[1,128], index: 2, kind: input, shape index: {}]
  %s3 = inlined_call_operand.vmem [shape: f32[1,128], index: 3, kind: input, shape index: {}]
  %s4 = inlined_call_operand.hbm [shape: bf16[3,128,128], index: 4, kind: input, shape index: {}]
  %s5 = inlined_call_operand.vmem [shape: f32[1,128], index: 5, kind: input, shape index: {}]
  %s6 = inlined_call_operand.vmem [shape: f32[1,128], index: 6, kind: input, shape index: {}]
  %s7 = inlined_call_operand.hbm [shape: bf16[64,128], index: 7, kind: input, shape index: {}]
  %s8 = inlined_call_operand.vmem [shape: f32[1,128], index: 8, kind: input, shape index: {}]
  %s9 = inlined_call_operand.vmem [shape: f32[1,128], index: 9, kind: input, shape index: {}]
  %s10 = inlined_call_operand.hbm [shape: f32[2,16,128], index: 10, kind: output, shape index: {}]
  %s11 = sld [smem:[#allocation0]]
  $region89: #{tpu_custom_call.1} parent=0
    _
  %s13 = ssub.s32 1, %s11
  %s14 = scalar_select 0, %s13, %s11
  $region1: #{tpu_custom_call.1} parent=0
    #allocation4 [shape = 'u8[8192]{0}', space=vmem, size = 0x2000, scoped, tag = 'input window, operand 0']
    #allocation5 [shape = 's32[2]{0}', space=sflag, size = 0x8, scoped, tag = 'scoped memory for tpu_custom_call.1']
    #allocation6 [shape = 's32[2]{0}', space=sflag, size = 0x8, scoped, tag = 'scoped memory for tpu_custom_call.1']
    #allocation7 [shape = 'u8[49152]{0}', space=vmem, size = 0xc000, scoped, tag = 'input window, operand 1, single buffered']
    #allocation8 [shape = 's32[1]{0}', space=sflag, size = 0x4, scoped, tag = 'scoped memory for tpu_custom_call.1']
    #allocation9 [shape = 'u8[98304]{0}', space=vmem, size = 0x18000, scoped, tag = 'input window, operand 4, single buffered']
    #allocation10 [shape = 'u8[16384]{0}', space=vmem, size = 0x4000, scoped, tag = 'input window, operand 7, single buffered']
    #allocation11 [shape = 's32[1]{0}', space=sflag, size = 0x4, scoped, tag = 'scoped memory for tpu_custom_call.1']
    #allocation12 [shape = 'u8[16384]{0}', space=vmem, size = 0x4000, scoped, tag = 'output window, operand 0']
    %15 = vsyncpa [#allocation5], 0
    %s16 = scalar_lea.sflag [#allocation5], 1
    %17 = vsyncpa %s16, 0
    %18 = vsyncpa [#allocation8], 0
    %19 = vsyncpa [#allocation11], 0
    %20 = vsyncpa [#allocation6], 0
    %s21 = scalar_lea.sflag [#allocation6], 1
    %22 = vsyncpa %s21, 0
    loop: start=0, step=1, limit=4
    $region2: #{tpu_custom_call.1} parent=1 // loop_pre_header
      _
    $region3: #{tpu_custom_call.1} parent=1 // loop_header
      %s24 = sphi 0, %s28
      %p25 = scmp.ge.s32.totalorder %s24, 4
      %s34 = sphi 0, %s36
      %s37 = sphi 0, %s34
      %s38 = sphi 0, %s37
      %s54 = sphi 0, %s38
      %s58 = sphi 0, %s58
      %s60 = sphi 0, %s58
      %s61 = sphi 0, %s60
      %s75 = sphi 0, %s61
      %s79 = sphi 0, %s79
      %s81 = sphi 0, %s79
      %s82 = sphi 0, %s81
      %s96 = sphi 0, %s82
      %s100 = sphi 0, %s100
      %s102 = sphi 0, %s100
      %s103 = sphi 0, %s102
      %s117 = sphi 0, %s103
      %s121 = sphi 0, %s121
      %s123 = sphi 0, %s121
      %s124 = sphi 0, %s123
      %s138 = sphi 0, %s124
      %s142 = sphi 0, %s142
      %s144 = sphi 0, %s142
      %s145 = sphi 0, %s144
      %s159 = sphi 0, %s145
      %s163 = sphi 0, %s163
      %s165 = sphi 0, %s163
      %s166 = sphi 0, %s165
      %s180 = sphi 0, %s166
      %s184 = sphi 0, %s184
      %s186 = sphi 0, %s184
      %s187 = sphi 0, %s186
      %s201 = sphi 0, %s187
      %s205 = sphi 0, %s205
      %s207 = sphi 0, %s205
      %s208 = sphi 0, %s207
      %s222 = sphi 0, %s208
      %s226 = sphi 0, %s226
      %s228 = sphi 0, %s226
      %s229 = sphi 0, %s228
      %s243 = sphi 0, %s229
      %s249 = sphi 0, %s251
      %s252 = sphi 0, %s249
      %s253 = sphi 0, %s252
      %s269 = sphi 0, %s253
    $region4: #{tpu_custom_call.1} parent=1 // loop_header_branch
      %27 = sbr.rel (%p25) target = $region8
    $region5: #{tpu_custom_call.1} parent=1 // loop_body
      %s29 = ssub.s32 %s24, 1
      %s30 = ssub.s32 %s24, 2
      %s31 = sadd.s32 %s24, 1
      %s32 = ssub.s32 %s24, %s31
      %p33 = scmp.eq.s32.totalorder %s32, 0
      %s35 = sadd.s32 %s34, 1
      %s36 = scalar_select %p33, %s34, %s35
      %p39 = pneg %p33
      %p40 = scmp.eq.s32.totalorder %s24, 1
      %p41 = por %p39, %p40
      %p42 = scmp.ne.s32.totalorder %s34, %s37
      %p43 = scmp.eq.s32.totalorder %s24, 0
      %p44 = por %p42, %p43
      %p45 = scmp.ne.s32.totalorder %s34, %s37
      %p46 = scmp.eq.s32.totalorder %s29, 1
      %p47 = por %p45, %p46
      %p48 = scmp.ne.s32.totalorder %s37, %s38
      %p49 = scmp.eq.s32.totalorder %s29, 0
      %p50 = por %p48, %p49
      %p51 = scmp.ne.s32.totalorder %s37, %s38
      %p52 = scmp.eq.s32.totalorder %s30, 1
      %p53 = por %p51, %p52
      %p55 = scmp.ne.s32.totalorder %s38, %s54
      %p56 = scmp.eq.s32.totalorder %s30, 0
      %p57 = por %p55, %p56
      %s59 = sadd.s32 %s58, 1
      %p62 = scmp.eq.s32.totalorder %s24, 1
      %p63 = scmp.ne.s32.totalorder %s58, %s60
      %p64 = scmp.eq.s32.totalorder %s24, 0
      %p65 = por %p63, %p64
      %p66 = scmp.ne.s32.totalorder %s58, %s60
      %p67 = scmp.eq.s32.totalorder %s29, 1
      %p68 = por %p66, %p67
      %p69 = scmp.ne.s32.totalorder %s60, %s61
      %p70 = scmp.eq.s32.totalorder %s29, 0
      %p71 = por %p69, %p70
      %p72 = scmp.ne.s32.totalorder %s60, %s61
      %p73 = scmp.eq.s32.totalorder %s30, 1
      %p74 = por %p72, %p73
      %p76 = scmp.ne.s32.totalorder %s61, %s75
      %p77 = scmp.eq.s32.totalorder %s30, 0
      %p78 = por %p76, %p77
      %s80 = sadd.s32 %s79, 1
      %p83 = scmp.eq.s32.totalorder %s24, 1
      %p84 = scmp.ne.s32.totalorder %s79, %s81
      %p85 = scmp.eq.s32.totalorder %s24, 0
      %p86 = por %p84, %p85
      %p87 = scmp.ne.s32.totalorder %s79, %s81
      %p88 = scmp.eq.s32.totalorder %s29, 1
      %p89 = por %p87, %p88
      %p90 = scmp.ne.s32.totalorder %s81, %s82
      %p91 = scmp.eq.s32.totalorder %s29, 0
      %p92 = por %p90, %p91
      %p93 = scmp.ne.s32.totalorder %s81, %s82
      %p94 = scmp.eq.s32.totalorder %s30, 1
      %p95 = por %p93, %p94
      %p97 = scmp.ne.s32.totalorder %s82, %s96
      %p98 = scmp.eq.s32.totalorder %s30, 0
      %p99 = por %p97, %p98
      %s101 = sadd.s32 %s100, 1
      %p104 = scmp.eq.s32.totalorder %s24, 1
      %p105 = scmp.ne.s32.totalorder %s100, %s102
      %p106 = scmp.eq.s32.totalorder %s24, 0
      %p107 = por %p105, %p106
      %p108 = scmp.ne.s32.totalorder %s100, %s102
      %p109 = scmp.eq.s32.totalorder %s29, 1
      %p110 = por %p108, %p109
      %p111 = scmp.ne.s32.totalorder %s102, %s103
      %p112 = scmp.eq.s32.totalorder %s29, 0
      %p113 = por %p111, %p112
      %p114 = scmp.ne.s32.totalorder %s102, %s103
      %p115 = scmp.eq.s32.totalorder %s30, 1
      %p116 = por %p114, %p115
      %p118 = scmp.ne.s32.totalorder %s103, %s117
      %p119 = scmp.eq.s32.totalorder %s30, 0
      %p120 = por %p118, %p119
      %s122 = sadd.s32 %s121, 1
      %p125 = scmp.eq.s32.totalorder %s24, 1
      %p126 = scmp.ne.s32.totalorder %s121, %s123
      %p127 = scmp.eq.s32.totalorder %s24, 0
      %p128 = por %p126, %p127
      %p129 = scmp.ne.s32.totalorder %s121, %s123
      %p130 = scmp.eq.s32.totalorder %s29, 1
      %p131 = por %p129, %p130
      %p132 = scmp.ne.s32.totalorder %s123, %s124
      %p133 = scmp.eq.s32.totalorder %s29, 0
      %p134 = por %p132, %p133
      %p135 = scmp.ne.s32.totalorder %s123, %s124
      %p136 = scmp.eq.s32.totalorder %s30, 1
      %p137 = por %p135, %p136
      %p139 = scmp.ne.s32.totalorder %s124, %s138
      %p140 = scmp.eq.s32.totalorder %s30, 0
      %p141 = por %p139, %p140
      %s143 = sadd.s32 %s142, 1
      %p146 = scmp.eq.s32.totalorder %s24, 1
      %p147 = scmp.ne.s32.totalorder %s142, %s144
      %p148 = scmp.eq.s32.totalorder %s24, 0
      %p149 = por %p147, %p148
      %p150 = scmp.ne.s32.totalorder %s142, %s144
      %p151 = scmp.eq.s32.totalorder %s29, 1
      %p152 = por %p150, %p151
      %p153 = scmp.ne.s32.totalorder %s144, %s145
      %p154 = scmp.eq.s32.totalorder %s29, 0
      %p155 = por %p153, %p154
      %p156 = scmp.ne.s32.totalorder %s144, %s145
      %p157 = scmp.eq.s32.totalorder %s30, 1
      %p158 = por %p156, %p157
      %p160 = scmp.ne.s32.totalorder %s145, %s159
      %p161 = scmp.eq.s32.totalorder %s30, 0
      %p162 = por %p160, %p161
      %s164 = sadd.s32 %s163, 1
      %p167 = scmp.eq.s32.totalorder %s24, 1
      %p168 = scmp.ne.s32.totalorder %s163, %s165
      %p169 = scmp.eq.s32.totalorder %s24, 0
      %p170 = por %p168, %p169
      %p171 = scmp.ne.s32.totalorder %s163, %s165
      %p172 = scmp.eq.s32.totalorder %s29, 1
      %p173 = por %p171, %p172
      %p174 = scmp.ne.s32.totalorder %s165, %s166
      %p175 = scmp.eq.s32.totalorder %s29, 0
      %p176 = por %p174, %p175
      %p177 = scmp.ne.s32.totalorder %s165, %s166
      %p178 = scmp.eq.s32.totalorder %s30, 1
      %p179 = por %p177, %p178
      %p181 = scmp.ne.s32.totalorder %s166, %s180
      %p182 = scmp.eq.s32.totalorder %s30, 0
      %p183 = por %p181, %p182
      %s185 = sadd.s32 %s184, 1
      %p188 = scmp.eq.s32.totalorder %s24, 1
      %p189 = scmp.ne.s32.totalorder %s184, %s186
      %p190 = scmp.eq.s32.totalorder %s24, 0
      %p191 = por %p189, %p190
      %p192 = scmp.ne.s32.totalorder %s184, %s186
      %p193 = scmp.eq.s32.totalorder %s29, 1
      %p194 = por %p192, %p193
      %p195 = scmp.ne.s32.totalorder %s186, %s187
      %p196 = scmp.eq.s32.totalorder %s29, 0
      %p197 = por %p195, %p196
      %p198 = scmp.ne.s32.totalorder %s186, %s187
      %p199 = scmp.eq.s32.totalorder %s30, 1
      %p200 = por %p198, %p199
      %p202 = scmp.ne.s32.totalorder %s187, %s201
      %p203 = scmp.eq.s32.totalorder %s30, 0
      %p204 = por %p202, %p203
      %s206 = sadd.s32 %s205, 1
      %p209 = scmp.eq.s32.totalorder %s24, 1
      %p210 = scmp.ne.s32.totalorder %s205, %s207
      %p211 = scmp.eq.s32.totalorder %s24, 0
      %p212 = por %p210, %p211
      %p213 = scmp.ne.s32.totalorder %s205, %s207
      %p214 = scmp.eq.s32.totalorder %s29, 1
      %p215 = por %p213, %p214
      %p216 = scmp.ne.s32.totalorder %s207, %s208
      %p217 = scmp.eq.s32.totalorder %s29, 0
      %p218 = por %p216, %p217
      %p219 = scmp.ne.s32.totalorder %s207, %s208
      %p220 = scmp.eq.s32.totalorder %s30, 1
      %p221 = por %p219, %p220
      %p223 = scmp.ne.s32.totalorder %s208, %s222
      %p224 = scmp.eq.s32.totalorder %s30, 0
      %p225 = por %p223, %p224
      %s227 = sadd.s32 %s226, 1
      %p230 = scmp.eq.s32.totalorder %s24, 1
      %p231 = scmp.ne.s32.totalorder %s226, %s228
      %p232 = scmp.eq.s32.totalorder %s24, 0
      %p233 = por %p231, %p232
      %p234 = scmp.ne.s32.totalorder %s226, %s228
      %p235 = scmp.eq.s32.totalorder %s29, 1
      %p236 = por %p234, %p235
      %p237 = scmp.ne.s32.totalorder %s228, %s229
      %p238 = scmp.eq.s32.totalorder %s29, 0
      %p239 = por %p237, %p238
      %p240 = scmp.ne.s32.totalorder %s228, %s229
      %p241 = scmp.eq.s32.totalorder %s30, 1
      %p242 = por %p240, %p241
      %p244 = scmp.ne.s32.totalorder %s229, %s243
      %p245 = scmp.eq.s32.totalorder %s30, 0
      %p246 = por %p244, %p245
      %s247 = ssub.s32 %s24, %s31
      %p248 = scmp.eq.s32.totalorder %s247, 0
      %s250 = sadd.s32 %s249, 1
      %s251 = scalar_select %p248, %s249, %s250
      %p254 = pneg %p248
      %p255 = scmp.eq.s32.totalorder %s24, 1
      %p256 = por %p254, %p255
      %p257 = scmp.ne.s32.totalorder %s249, %s252
      %p258 = scmp.eq.s32.totalorder %s24, 0
      %p259 = por %p257, %p258
      %p260 = scmp.ne.s32.totalorder %s249, %s252
      %p261 = scmp.eq.s32.totalorder %s29, 1
      %p262 = por %p260, %p261
      %p263 = scmp.ne.s32.totalorder %s252, %s253
      %p264 = scmp.eq.s32.totalorder %s29, 0
      %p265 = por %p263, %p264
      %p266 = scmp.ne.s32.totalorder %s252, %s253
      %p267 = scmp.eq.s32.totalorder %s30, 1
      %p268 = por %p266, %p267
      %p270 = scmp.ne.s32.totalorder %s253, %s269
      %p271 = scmp.eq.s32.totalorder %s30, 0
      %p272 = por %p270, %p271
      %p273 = scmp.le.s32.totalorder 1, %s24
      %p274 = scmp.lt.s32.totalorder %s24, 3
      %p275 = pnand %p273, %p274
      %p276 = pneg %p275
      // Predicated region
      $region9: #{tpu_custom_call.1} parent=5 // pred_check
        _
      $region10: #{tpu_custom_call.1} parent=5 // pred_check_branch
        %278 = sbr.rel (%p275) target = $region12
      $region11: #{tpu_custom_call.1} parent=5 // pred_region
        %s279 = ssub.s32 %s24, 1
        // Predicated region
        $region13: #{tpu_custom_call.1} parent=11 // pred_check
          %p280 = pneg %p71
        $region14: #{tpu_custom_call.1} parent=11 // pred_check_branch
          %282 = sbr.rel (%p280) target = $region16
        $region15: #{tpu_custom_call.1} parent=11 // pred_region
          %s284 = ssub.s32 1536, 1536
          %285 = vsyncadd [#allocation8], %s284
          %s286 = sshll.u32 [#allocation7], 4
          %s287 = int_to_ptr.vmem [resolvable:$true] %s286
          %292 = dma.hbm_to_vmem [thread:$0]  %s1, 1536, %s287, [#allocation8], 64, 64, 4
        $region16: #{tpu_custom_call.1} parent=11 // pred_fallthru
          _
        // Predicated region
        $region17: #{tpu_custom_call.1} parent=11 // pred_check
          %p293 = pneg %p92
        $region18: #{tpu_custom_call.1} parent=11 // pred_check_branch
          %295 = sbr.rel (%p293) target = $region20
        $region19: #{tpu_custom_call.1} parent=11 // pred_region
          _
        $region20: #{tpu_custom_call.1} parent=11 // pred_fallthru
          _
        // Predicated region
        $region21: #{tpu_custom_call.1} parent=11 // pred_check
          %p296 = pneg %p113
        $region22: #{tpu_custom_call.1} parent=11 // pred_check_branch
          %298 = sbr.rel (%p296) target = $region24
        $region23: #{tpu_custom_call.1} parent=11 // pred_region
          _
        $region24: #{tpu_custom_call.1} parent=11 // pred_fallthru
          _
        // Predicated region
        $region25: #{tpu_custom_call.1} parent=11 // pred_check
          %p299 = pneg %p134
        $region26: #{tpu_custom_call.1} parent=11 // pred_check_branch
          %301 = sbr.rel (%p299) target = $region28
        $region27: #{tpu_custom_call.1} parent=11 // pred_region
          %s303 = ssub.s32 3072, 3072
          %304 = vsyncadd [#allocation8], %s303
          %s305 = sshll.u32 [#allocation9], 4
          %s306 = int_to_ptr.vmem [resolvable:$true] %s305
          %311 = dma.hbm_to_vmem [thread:$0]  %s4, 3072, %s306, [#allocation8], 64, 64, 4
        $region28: #{tpu_custom_call.1} parent=11 // pred_fallthru
          _
        // Predicated region
        $region29: #{tpu_custom_call.1} parent=11 // pred_check
          %p312 = pneg %p155
        $region30: #{tpu_custom_call.1} parent=11 // pred_check_branch
          %314 = sbr.rel (%p312) target = $region32
        $region31: #{tpu_custom_call.1} parent=11 // pred_region
          _
        $region32: #{tpu_custom_call.1} parent=11 // pred_fallthru
          _
        // Predicated region
        $region33: #{tpu_custom_call.1} parent=11 // pred_check
          %p315 = pneg %p176
        $region34: #{tpu_custom_call.1} parent=11 // pred_check_branch
          %317 = sbr.rel (%p315) target = $region36
        $region35: #{tpu_custom_call.1} parent=11 // pred_region
          _
        $region36: #{tpu_custom_call.1} parent=11 // pred_fallthru
          _
        // Predicated region
        $region37: #{tpu_custom_call.1} parent=11 // pred_check
          %p318 = pneg %p197
        $region38: #{tpu_custom_call.1} parent=11 // pred_check_branch
          %320 = sbr.rel (%p318) target = $region40
        $region39: #{tpu_custom_call.1} parent=11 // pred_region
          %s322 = ssub.s32 512, 512
          %323 = vsyncadd [#allocation11], %s322
          %s324 = sshll.u32 [#allocation10], 4
          %s325 = int_to_ptr.vmem [resolvable:$true] %s324
          %330 = dma.hbm_to_vmem [thread:$0]  %s7, 512, %s325, [#allocation11], 64, 64, 4
        $region40: #{tpu_custom_call.1} parent=11 // pred_fallthru
          _
        // Predicated region
        $region41: #{tpu_custom_call.1} parent=11 // pred_check
          %p331 = pneg %p218
        $region42: #{tpu_custom_call.1} parent=11 // pred_check_branch
          %333 = sbr.rel (%p331) target = $region44
        $region43: #{tpu_custom_call.1} parent=11 // pred_region
          _
        $region44: #{tpu_custom_call.1} parent=11 // pred_fallthru
          _
        // Predicated region
        $region45: #{tpu_custom_call.1} parent=11 // pred_check
          %p334 = pneg %p239
        $region46: #{tpu_custom_call.1} parent=11 // pred_check_branch
          %336 = sbr.rel (%p334) target = $region48
        $region47: #{tpu_custom_call.1} parent=11 // pred_region
          _
        $region48: #{tpu_custom_call.1} parent=11 // pred_fallthru
          _
      $region12: #{tpu_custom_call.1} parent=5 // pred_fallthru
        _
      %p337 = scmp.lt.s32.totalorder %s24, 2
      // Predicated region
      $region49: #{tpu_custom_call.1} parent=5 // pred_check
        %p338 = pneg %p337
      $region50: #{tpu_custom_call.1} parent=5 // pred_check_branch
        %340 = sbr.rel (%p338) target = $region52
      $region51: #{tpu_custom_call.1} parent=5 // pred_region
        // Predicated region
        $region53: #{tpu_custom_call.1} parent=51 // pred_check
          %p341 = pneg %p44
        $region54: #{tpu_custom_call.1} parent=51 // pred_check_branch
          %343 = sbr.rel (%p341) target = $region56
        $region55: #{tpu_custom_call.1} parent=51 // pred_region
          %s344 = sand.u32 %s34, 1
          %s345 = scalar_lea.sflag [#allocation5], %s344
          %s346 = sand.u32 %s34, 1
          %s347 = smul.addr %s346, 8
          %s348 = scalar_lea.vmem [#allocation4], %s347
          %s350 = ssub.s32 128, 128
          %351 = vsyncadd %s345, %s350
          %s352 = smul.addr %s24, 2
          %s353 = smul.addr %s352, 64
          %s354 = scalar_lea.hbm %s0, %s353
          %s355 = sshll.u32 %s348, 4
          %s356 = int_to_ptr.vmem [resolvable:$true] %s355
          %361 = dma.hbm_to_vmem [thread:$0]  %s354, 128, %s356, %s345, 64, 64, 4
        $region56: #{tpu_custom_call.1} parent=51 // pred_fallthru
          _
      $region52: #{tpu_custom_call.1} parent=5 // pred_fallthru
        _
      %p362 = scmp.le.s32.totalorder 1, %s24
      %p363 = scmp.lt.s32.totalorder %s24, 3
      %p364 = pnand %p362, %p363
      %p365 = pneg %p364
      // Predicated region
      $region57: #{tpu_custom_call.1} parent=5 // pred_check
        _
      $region58: #{tpu_custom_call.1} parent=5 // pred_check_branch
        %367 = sbr.rel (%p364) target = $region60
      $region59: #{tpu_custom_call.1} parent=5 // pred_region
        %s368 = ssub.s32 %s24, 1
        %s369 = sand.u32 %s37, 1
        %s370 = scalar_lea.sflag [#allocation5], %s369
        %s371 = sand.u32 %s37, 1
        %s372 = smul.addr %s371, 8
        %s373 = scalar_lea.vmem [#allocation4], %s372
        // Predicated region
        $region61: #{tpu_custom_call.1} parent=59 // pred_check
          %p374 = pneg %p50
        $region62: #{tpu_custom_call.1} parent=59 // pred_check_branch
          %376 = sbr.rel (%p374) target = $region64
        $region63: #{tpu_custom_call.1} parent=59 // pred_region
          %377 = dma.done %s370, 128
        $region64: #{tpu_custom_call.1} parent=59 // pred_fallthru
          _
        // Predicated region
        $region65: #{tpu_custom_call.1} parent=59 // pred_check
          %p378 = pneg %p71
        $region66: #{tpu_custom_call.1} parent=59 // pred_check_branch
          %380 = sbr.rel (%p378) target = $region68
        $region67: #{tpu_custom_call.1} parent=59 // pred_region
          %381 = dma.done [#allocation8], 1536
        $region68: #{tpu_custom_call.1} parent=59 // pred_fallthru
          _
        // Predicated region
        $region69: #{tpu_custom_call.1} parent=59 // pred_check
          %p382 = pneg %p134
        $region70: #{tpu_custom_call.1} parent=59 // pred_check_branch
          %384 = sbr.rel (%p382) target = $region72
        $region71: #{tpu_custom_call.1} parent=59 // pred_region
          %385 = dma.done [#allocation8], 3072
        $region72: #{tpu_custom_call.1} parent=59 // pred_fallthru
          _
        // Predicated region
        $region73: #{tpu_custom_call.1} parent=59 // pred_check
          %p386 = pneg %p197
        $region74: #{tpu_custom_call.1} parent=59 // pred_check_branch
          %388 = sbr.rel (%p386) target = $region76
        $region75: #{tpu_custom_call.1} parent=59 // pred_region
          %389 = dma.done [#allocation11], 512
        $region76: #{tpu_custom_call.1} parent=59 // pred_fallthru
          _
        %s390 = sand.u32 %s37, 1
        %s391 = scalar_lea.sflag [#allocation5], %s390
        %s392 = sand.u32 %s37, 1
        %s393 = smul.addr %s392, 8
        %s394 = scalar_lea.vmem [#allocation4], %s393
        %p395 = pneg %p50
        %p396 = pneg %p47
        %p397 = pneg %p71
        %p398 = pneg %p68
        %p399 = pneg %p92
        %p400 = pneg %p89
        %p401 = pneg %p113
        %p402 = pneg %p110
        %p403 = pneg %p134
        %p404 = pneg %p131
        %p405 = pneg %p155
        %p406 = pneg %p152
        %p407 = pneg %p176
        %p408 = pneg %p173
        %p409 = pneg %p197
        %p410 = pneg %p194
        %p411 = pneg %p218
        %p412 = pneg %p215
        %p413 = pneg %p239
        %p414 = pneg %p236
        %p415 = pneg %p265
        %p416 = pneg %p262
        %s417 = sand.u32 %s252, 1
        %s418 = scalar_lea.sflag [#allocation6], %s417
        %s419 = sand.u32 %s252, 1
        %s420 = smul.addr %s419, 16
        %s421 = scalar_lea.vmem [#allocation12], %s420
        %v423 = vld [vmem:[%s373] sm:$0xf]
        %v424 = vld [vmem:[%s373 + $0x4] sm:$0xf]
        %s425 = scalar_lea.vmem [#allocation7], 32
        %v426 = vld [vmem:[%s425] sm:$0xf]
        %v427 = vld [vmem:[%s425 + $0x4] sm:$0xf]
        %v428 = vld [vmem:[%s425 + $0x8] sm:$0xf]
        %v429 = vld [vmem:[%s425 + $0xc] sm:$0xf]
        %v430 = vld [vmem:[%s425 + $0x10] sm:$0xf]
        %v431 = vld [vmem:[%s425 + $0x14] sm:$0xf]
        %v432 = vld [vmem:[%s425 + $0x18] sm:$0xf]
        %v433 = vld [vmem:[%s425 + $0x1c] sm:$0xf]
        %v436 = vunpack.c.l.b16 %v423
        %v437 = vunpack.c.l.b16 %v424
        %v438 = vpack.c.b16 %v437, %v436
        %v447 = vunpack.c.l.b16 %v426
        %v448 = vunpack.c.l.b16 %v427
        %v449 = vunpack.c.l.b16 %v428
        %v450 = vunpack.c.l.b16 %v429
        %v451 = vunpack.c.l.b16 %v430
        %v452 = vunpack.c.l.b16 %v431
        %v453 = vunpack.c.l.b16 %v432
        %v454 = vunpack.c.l.b16 %v433
        %v455 = vpack.c.b16 %v448, %v447
        %v456 = vpack.c.b16 %v450, %v449
        %v457 = vpack.c.b16 %v452, %v451
        %v458 = vpack.c.b16 %v454, %v453
        %vm463 = vcmask 523264
        %v465 = vsel %vm463, %v438, 0
        %467 = vmatprep.subr.bf16.mxu0 0
        %468 = vmatpush1.bf16.msra.mxu0 %v455
        %469 = vmatprep.subr.bf16.mxu0 0
        %470 = vmatpush1.bf16.msra.mxu0 %v456
        %471 = vmatprep.subr.bf16.mxu0 0
        %472 = vmatpush1.bf16.msra.mxu0 %v457
        %473 = vmatprep.subr.bf16.mxu0 0
        %474 = vmatpush1.bf16.msra.mxu0 %v458
        %475 = vmatprep.subr.bf16.mxu0 0
        %476 = vmatpush1.bf16.msra.mxu0 0
        %477 = vmatprep.subr.bf16.mxu0 0
        %478 = vmatpush1.bf16.msra.mxu0 0
        %479 = vmatprep.subr.bf16.mxu0 0
        %480 = vmatpush1.bf16.msra.mxu0 0
        %481 = vmatprep.subr.bf16.mxu0 0
        %482 = vmatpush1.bf16.msra.mxu0 0
        %483 = vmatprep.subr.bf16.mxu0 0
        %484 = vmatpush1.bf16.msra.mxu0 0
        %485 = vmatprep.subr.bf16.mxu0 0
        %486 = vmatpush1.bf16.msra.mxu0 0
        %487 = vmatprep.subr.bf16.mxu0 0
        %488 = vmatpush1.bf16.msra.mxu0 0
        %489 = vmatprep.subr.bf16.mxu0 0
        %490 = vmatpush1.bf16.msra.mxu0 0
        %491 = vmatprep.subr.bf16.mxu0 0
        %492 = vmatpush1.bf16.msra.mxu0 0
        %493 = vmatprep.subr.bf16.mxu0 0
        %494 = vmatpush1.bf16.msra.mxu0 0
        %495 = vmatprep.subr.bf16.mxu0 0
        %496 = vmatpush1.bf16.msra.mxu0 0
        %497 = vmatprep.subr.bf16.mxu0 0
        %498 = vmatpush1.bf16.msra.mxu0 0
        %499 = vmatprep.mubr.bf16.mxu0 0
        %500 = vmatmul.mubr.bf16.gmra.mrb[0].mxu0 %v465
        %v501 = vpop.f32.mrb[0].mxu0
        %v502 = vadd.f32 0.0, %v501
        %v503 = vpop.f32.mrb[0].mxu0
        %v504 = vpop.f32.mrb[0].mxu0
        %v505 = vadd.f32 0.0, %v504
        %v506 = vpop.f32.mrb[0].mxu0
        %507 = vdwg.mxu0
        %508 = vst [vmem:[#allocation2] sm:$0xff] %v502
        %509 = vst [vmem:[#allocation2 + $0x8] sm:$0xff] %v505
        %v510 = vld [vmem:[#allocation2 + $0x1] sm:$0xff]
        %v511 = vld [vmem:[#allocation2 + $0x9] sm:$0x7f]
        %v512 = vld [vmem:[%s373] sm:$0xf]
        %v513 = vld [vmem:[%s373 + $0x4] sm:$0xf]
        %v514 = vld [vmem:[#allocation7] sm:$0xf]
        %v515 = vld [vmem:[#allocation7 + $0x4] sm:$0xf]
        %v516 = vld [vmem:[#allocation7 + $0x8] sm:$0xf]
        %v517 = vld [vmem:[#allocation7 + $0xc] sm:$0xf]
        %v518 = vld [vmem:[#allocation7 + $0x10] sm:$0xf]
        %v519 = vld [vmem:[#allocation7 + $0x14] sm:$0xf]
        %v520 = vld [vmem:[#allocation7 + $0x18] sm:$0xf]
        %v521 = vld [vmem:[#allocation7 + $0x1c] sm:$0xf]
        %v524 = vunpack.c.l.b16 %v512
        %v525 = vunpack.c.l.b16 %v513
        %v526 = vpack.c.b16 %v525, %v524
        %v535 = vunpack.c.l.b16 %v514
        %v536 = vunpack.c.l.b16 %v515
        %v537 = vunpack.c.l.b16 %v516
        %v538 = vunpack.c.l.b16 %v517
        %v539 = vunpack.c.l.b16 %v518
        %v540 = vunpack.c.l.b16 %v519
        %v541 = vunpack.c.l.b16 %v520
        %v542 = vunpack.c.l.b16 %v521
        %v543 = vpack.c.b16 %v536, %v535
        %v544 = vpack.c.b16 %v538, %v537
        %v545 = vpack.c.b16 %v540, %v539
        %v546 = vpack.c.b16 %v542, %v541
        %v552 = vsel %vm463, %v526, 0
        %554 = vmatprep.subr.bf16.mxu0 0
        %555 = vmatpush1.bf16.msra.mxu0 %v543
        %556 = vmatprep.subr.bf16.mxu0 0
        %557 = vmatpush1.bf16.msra.mxu0 %v544
        %558 = vmatprep.subr.bf16.mxu0 0
        %559 = vmatpush1.bf16.msra.mxu0 %v545
        %560 = vmatprep.subr.bf16.mxu0 0
        %561 = vmatpush1.bf16.msra.mxu0 %v546
        %562 = vmatprep.subr.bf16.mxu0 0
        %563 = vmatpush1.bf16.msra.mxu0 0
        %564 = vmatprep.subr.bf16.mxu0 0
        %565 = vmatpush1.bf16.msra.mxu0 0
        %566 = vmatprep.subr.bf16.mxu0 0
        %567 = vmatpush1.bf16.msra.mxu0 0
        %568 = vmatprep.subr.bf16.mxu0 0
        %569 = vmatpush1.bf16.msra.mxu0 0
        %570 = vmatprep.subr.bf16.mxu0 0
        %571 = vmatpush1.bf16.msra.mxu0 0
        %572 = vmatprep.subr.bf16.mxu0 0
        %573 = vmatpush1.bf16.msra.mxu0 0
        %574 = vmatprep.subr.bf16.mxu0 0
        %575 = vmatpush1.bf16.msra.mxu0 0
        %576 = vmatprep.subr.bf16.mxu0 0
        %577 = vmatpush1.bf16.msra.mxu0 0
        %578 = vmatprep.subr.bf16.mxu0 0
        %579 = vmatpush1.bf16.msra.mxu0 0
        %580 = vmatprep.subr.bf16.mxu0 0
        %581 = vmatpush1.bf16.msra.mxu0 0
        %582 = vmatprep.subr.bf16.mxu0 0
        %583 = vmatpush1.bf16.msra.mxu0 0
        %584 = vmatprep.subr.bf16.mxu0 0
        %585 = vmatpush1.bf16.msra.mxu0 0
        %586 = vmatprep.mubr.bf16.mxu0 0
        %587 = vmatmul.mubr.bf16.gmra.mrb[0].mxu0 %v552
        %v588 = vpop.f32.mrb[0].mxu0
        %v589 = vadd.f32 0.0, %v588
        %v590 = vpop.f32.mrb[0].mxu0
        %v591 = vpop.f32.mrb[0].mxu0
        %v592 = vadd.f32 0.0, %v591
        %v593 = vpop.f32.mrb[0].mxu0
        %594 = vdwg.mxu0
        %v595 = vadd.f32 %v510, %v589
        %v596 = vadd.f32 %v511, %v592
        %597 = vst [vmem:[#allocation2 + $0x1] sm:$0xff] %v595
        %598 = vst [vmem:[#allocation2 + $0x9] sm:$0x7f] %v596
        %v599 = vld [vmem:[#allocation2] sm:$0xff]
        %v600 = vld [vmem:[#allocation2 + $0x8] sm:$0x7f]
        %v601 = vld [vmem:[%s373] sm:$0xf]
        %v602 = vld [vmem:[%s373 + $0x4] sm:$0xf]
        %s603 = scalar_lea.vmem [#allocation7], 64
        %v604 = vld [vmem:[%s603] sm:$0xf]
        %v605 = vld [vmem:[%s603 + $0x4] sm:$0xf]
        %v606 = vld [vmem:[%s603 + $0x8] sm:$0xf]
        %v607 = vld [vmem:[%s603 + $0xc] sm:$0xf]
        %v608 = vld [vmem:[%s603 + $0x10] sm:$0xf]
        %v609 = vld [vmem:[%s603 + $0x14] sm:$0xf]
        %v610 = vld [vmem:[%s603 + $0x18] sm:$0xf]
        %v611 = vld [vmem:[%s603 + $0x1c] sm:$0xf]
        %v614 = vunpack.c.l.b16 %v601
        %v615 = vunpack.c.l.b16 %v602
        %v616 = vpack.c.b16 %v615, %v614
        %v618 = vshrl.u32 %v616, 16
        %v620 = vshll.u32 %v616, 16
        %v622 = vrot.slane %v620, 1
        %v623 = vor.u32 %v618, %v622
        %v632 = vunpack.c.l.b16 %v604
        %v633 = vunpack.c.l.b16 %v605
        %v634 = vunpack.c.l.b16 %v606
        %v635 = vunpack.c.l.b16 %v607
        %v636 = vunpack.c.l.b16 %v608
        %v637 = vunpack.c.l.b16 %v609
        %v638 = vunpack.c.l.b16 %v610
        %v639 = vunpack.c.l.b16 %v611
        %v640 = vpack.c.b16 %v633, %v632
        %v641 = vpack.c.b16 %v635, %v634
        %v642 = vpack.c.b16 %v637, %v636
        %v643 = vpack.c.b16 %v639, %v638
        %v649 = vsel %vm463, %v623, 0
        %651 = vmatprep.subr.bf16.mxu0 0
        %652 = vmatpush1.bf16.msra.mxu0 %v640
        %653 = vmatprep.subr.bf16.mxu0 0
        %654 = vmatpush1.bf16.msra.mxu0 %v641
        %655 = vmatprep.subr.bf16.mxu0 0
        %656 = vmatpush1.bf16.msra.mxu0 %v642
        %657 = vmatprep.subr.bf16.mxu0 0
        %658 = vmatpush1.bf16.msra.mxu0 %v643
        %659 = vmatprep.subr.bf16.mxu0 0
        %660 = vmatpush1.bf16.msra.mxu0 0
        %661 = vmatprep.subr.bf16.mxu0 0
        %662 = vmatpush1.bf16.msra.mxu0 0
        %663 = vmatprep.subr.bf16.mxu0 0
        %664 = vmatpush1.bf16.msra.mxu0 0
        %665 = vmatprep.subr.bf16.mxu0 0
        %666 = vmatpush1.bf16.msra.mxu0 0
        %667 = vmatprep.subr.bf16.mxu0 0
        %668 = vmatpush1.bf16.msra.mxu0 0
        %669 = vmatprep.subr.bf16.mxu0 0
        %670 = vmatpush1.bf16.msra.mxu0 0
        %671 = vmatprep.subr.bf16.mxu0 0
        %672 = vmatpush1.bf16.msra.mxu0 0
        %673 = vmatprep.subr.bf16.mxu0 0
        %674 = vmatpush1.bf16.msra.mxu0 0
        %675 = vmatprep.subr.bf16.mxu0 0
        %676 = vmatpush1.bf16.msra.mxu0 0
        %677 = vmatprep.subr.bf16.mxu0 0
        %678 = vmatpush1.bf16.msra.mxu0 0
        %679 = vmatprep.subr.bf16.mxu0 0
        %680 = vmatpush1.bf16.msra.mxu0 0
        %681 = vmatprep.subr.bf16.mxu0 0
        %682 = vmatpush1.bf16.msra.mxu0 0
        %683 = vmatprep.mubr.bf16.mxu0 0
        %684 = vmatmul.mubr.bf16.gmra.mrb[0].mxu0 %v649
        %v685 = vpop.f32.mrb[0].mxu0
        %v686 = vadd.f32 0.0, %v685
        %v687 = vpop.f32.mrb[0].mxu0
        %v688 = vpop.f32.mrb[0].mxu0
        %v689 = vadd.f32 0.0, %v688
        %v690 = vpop.f32.mrb[0].mxu0
        %691 = vdwg.mxu0
        %v692 = vadd.f32 %v599, %v686
        %v693 = vadd.f32 %v600, %v689
        %694 = vst [vmem:[#allocation2] sm:$0xff] %v692
        %695 = vst [vmem:[#allocation2 + $0x8] sm:$0x7f] %v693
        %v696 = vld [vmem:[#allocation2] sm:$0xff]
        %v697 = vld [vmem:[#allocation2 + $0x8] sm:$0xff]
        %v698 = vld [vmem:[%s2] sm:$0x1]
        %v700 = vlaneseq
        %v701 = vshrl.u32 %v700, 7
        %v702 = vsub.s32 0, %v701
        %v703 = vrot.slane %v698, %v702
        %v705 = vmul.f32 %v696, %v703
        %v706 = vmul.f32 %v697, %v703
        %v707 = vld [vmem:[%s3] sm:$0x1]
        %v709 = vlaneseq
        %v710 = vshrl.u32 %v709, 7
        %v711 = vsub.s32 0, %v710
        %v712 = vrot.slane %v707, %v711
        %v714 = vadd.f32 %v705, %v712
        %v715 = vadd.f32 %v706, %v712
        %v716 = vmax.f32 %v714, 0.0
        %v717 = vmax.f32 %v715, 0.0
        %v718 = vpack.c.bf16 %v717, %v716
        %719 = vst [vmem:[#allocation3] sm:$0xff] %v718
        %v720 = vld [vmem:[#allocation3] sm:$0xff]
        %s721 = scalar_lea.vmem [#allocation9], 64
        %v722 = vld [vmem:[%s721] sm:$0xf]
        %v723 = vld [vmem:[%s721 + $0x4] sm:$0xf]
        %v724 = vld [vmem:[%s721 + $0x8] sm:$0xf]
        %v725 = vld [vmem:[%s721 + $0xc] sm:$0xf]
        %v726 = vld [vmem:[%s721 + $0x10] sm:$0xf]
        %v727 = vld [vmem:[%s721 + $0x14] sm:$0xf]
        %v728 = vld [vmem:[%s721 + $0x18] sm:$0xf]
        %v729 = vld [vmem:[%s721 + $0x1c] sm:$0xf]
        %v730 = vld [vmem:[%s721 + $0x20] sm:$0xf]
        %v731 = vld [vmem:[%s721 + $0x24] sm:$0xf]
        %v732 = vld [vmem:[%s721 + $0x28] sm:$0xf]
        %v733 = vld [vmem:[%s721 + $0x2c] sm:$0xf]
        %v734 = vld [vmem:[%s721 + $0x30] sm:$0xf]
        %v735 = vld [vmem:[%s721 + $0x34] sm:$0xf]
        %v736 = vld [vmem:[%s721 + $0x38] sm:$0xf]
        %v737 = vld [vmem:[%s721 + $0x3c] sm:$0xf]
        %v754 = vunpack.c.l.b16 %v722
        %v755 = vunpack.c.l.b16 %v723
        %v756 = vunpack.c.l.b16 %v724
        %v757 = vunpack.c.l.b16 %v725
        %v758 = vunpack.c.l.b16 %v726
        %v759 = vunpack.c.l.b16 %v727
        %v760 = vunpack.c.l.b16 %v728
        %v761 = vunpack.c.l.b16 %v729
        %v762 = vunpack.c.l.b16 %v730
        %v763 = vunpack.c.l.b16 %v731
        %v764 = vunpack.c.l.b16 %v732
        %v765 = vunpack.c.l.b16 %v733
        %v766 = vunpack.c.l.b16 %v734
        %v767 = vunpack.c.l.b16 %v735
        %v768 = vunpack.c.l.b16 %v736
        %v769 = vunpack.c.l.b16 %v737
        %v770 = vpack.c.b16 %v755, %v754
        %v771 = vpack.c.b16 %v757, %v756
        %v772 = vpack.c.b16 %v759, %v758
        %v773 = vpack.c.b16 %v761, %v760
        %v774 = vpack.c.b16 %v763, %v762
        %v775 = vpack.c.b16 %v765, %v764
        %v776 = vpack.c.b16 %v767, %v766
        %v777 = vpack.c.b16 %v769, %v768
        %786 = vmatprep.subr.bf16.mxu0 0
        %787 = vmatpush1.bf16.msra.mxu0 %v770
        %788 = vmatprep.subr.bf16.mxu0 0
        %789 = vmatpush1.bf16.msra.mxu0 %v771
        %790 = vmatprep.subr.bf16.mxu0 0
        %791 = vmatpush1.bf16.msra.mxu0 %v772
        %792 = vmatprep.subr.bf16.mxu0 0
        %793 = vmatpush1.bf16.msra.mxu0 %v773
        %794 = vmatprep.subr.bf16.mxu0 0
        %795 = vmatpush1.bf16.msra.mxu0 %v774
        %796 = vmatprep.subr.bf16.mxu0 0
        %797 = vmatpush1.bf16.msra.mxu0 %v775
        %798 = vmatprep.subr.bf16.mxu0 0
        %799 = vmatpush1.bf16.msra.mxu0 %v776
        %800 = vmatprep.subr.bf16.mxu0 0
        %801 = vmatpush1.bf16.msra.mxu0 %v777
        %802 = vmatprep.subr.bf16.mxu0 0
        %803 = vmatpush1.bf16.msra.mxu0 0
        %804 = vmatprep.subr.bf16.mxu0 0
        %805 = vmatpush1.bf16.msra.mxu0 0
        %806 = vmatprep.subr.bf16.mxu0 0
        %807 = vmatpush1.bf16.msra.mxu0 0
        %808 = vmatprep.subr.bf16.mxu0 0
        %809 = vmatpush1.bf16.msra.mxu0 0
        %810 = vmatprep.subr.bf16.mxu0 0
        %811 = vmatpush1.bf16.msra.mxu0 0
        %812 = vmatprep.subr.bf16.mxu0 0
        %813 = vmatpush1.bf16.msra.mxu0 0
        %814 = vmatprep.subr.bf16.mxu0 0
        %815 = vmatpush1.bf16.msra.mxu0 0
        %816 = vmatprep.subr.bf16.mxu0 0
        %817 = vmatpush1.bf16.msra.mxu0 0
        %818 = vmatprep.mubr.bf16.mxu0 0
        %819 = vmatmul.mubr.bf16.gmra.mrb[0].mxu0 %v720
        %v820 = vpop.f32.mrb[0].mxu0
        %v821 = vadd.f32 0.0, %v820
        %v822 = vpop.f32.mrb[0].mxu0
        %v823 = vpop.f32.mrb[0].mxu0
        %v824 = vadd.f32 0.0, %v823
        %v825 = vpop.f32.mrb[0].mxu0
        %826 = vdwg.mxu0
        %827 = vst [vmem:[#allocation2] sm:$0xff] %v821
        %828 = vst [vmem:[#allocation2 + $0x8] sm:$0xff] %v824
        %v829 = vld [vmem:[#allocation2 + $0x1] sm:$0xff]
        %v830 = vld [vmem:[#allocation2 + $0x9] sm:$0x7f]
        %v831 = vld [vmem:[#allocation3] sm:$0xff]
        %v832 = vld [vmem:[#allocation9] sm:$0xf]
        %v833 = vld [vmem:[#allocation9 + $0x4] sm:$0xf]
        %v834 = vld [vmem:[#allocation9 + $0x8] sm:$0xf]
        %v835 = vld [vmem:[#allocation9 + $0xc] sm:$0xf]
        %v836 = vld [vmem:[#allocation9 + $0x10] sm:$0xf]
        %v837 = vld [vmem:[#allocation9 + $0x14] sm:$0xf]
        %v838 = vld [vmem:[#allocation9 + $0x18] sm:$0xf]
        %v839 = vld [vmem:[#allocation9 + $0x1c] sm:$0xf]
        %v840 = vld [vmem:[#allocation9 + $0x20] sm:$0xf]
        %v841 = vld [vmem:[#allocation9 + $0x24] sm:$0xf]
        %v842 = vld [vmem:[#allocation9 + $0x28] sm:$0xf]
        %v843 = vld [vmem:[#allocation9 + $0x2c] sm:$0xf]
        %v844 = vld [vmem:[#allocation9 + $0x30] sm:$0xf]
        %v845 = vld [vmem:[#allocation9 + $0x34] sm:$0xf]
        %v846 = vld [vmem:[#allocation9 + $0x38] sm:$0xf]
        %v847 = vld [vmem:[#allocation9 + $0x3c] sm:$0xf]
        %v864 = vunpack.c.l.b16 %v832
        %v865 = vunpack.c.l.b16 %v833
        %v866 = vunpack.c.l.b16 %v834
        %v867 = vunpack.c.l.b16 %v835
        %v868 = vunpack.c.l.b16 %v836
        %v869 = vunpack.c.l.b16 %v837
        %v870 = vunpack.c.l.b16 %v838
        %v871 = vunpack.c.l.b16 %v839
        %v872 = vunpack.c.l.b16 %v840
        %v873 = vunpack.c.l.b16 %v841
        %v874 = vunpack.c.l.b16 %v842
        %v875 = vunpack.c.l.b16 %v843
        %v876 = vunpack.c.l.b16 %v844
        %v877 = vunpack.c.l.b16 %v845
        %v878 = vunpack.c.l.b16 %v846
        %v879 = vunpack.c.l.b16 %v847
        %v880 = vpack.c.b16 %v865, %v864
        %v881 = vpack.c.b16 %v867, %v866
        %v882 = vpack.c.b16 %v869, %v868
        %v883 = vpack.c.b16 %v871, %v870
        %v884 = vpack.c.b16 %v873, %v872
        %v885 = vpack.c.b16 %v875, %v874
        %v886 = vpack.c.b16 %v877, %v876
        %v887 = vpack.c.b16 %v879, %v878
        %896 = vmatprep.subr.bf16.mxu0 0
        %897 = vmatpush1.bf16.msra.mxu0 %v880
        %898 = vmatprep.subr.bf16.mxu0 0
        %899 = vmatpush1.bf16.msra.mxu0 %v881
        %900 = vmatprep.subr.bf16.mxu0 0
        %901 = vmatpush1.bf16.msra.mxu0 %v882
        %902 = vmatprep.subr.bf16.mxu0 0
        %903 = vmatpush1.bf16.msra.mxu0 %v883
        %904 = vmatprep.subr.bf16.mxu0 0
        %905 = vmatpush1.bf16.msra.mxu0 %v884
        %906 = vmatprep.subr.bf16.mxu0 0
        %907 = vmatpush1.bf16.msra.mxu0 %v885
        %908 = vmatprep.subr.bf16.mxu0 0
        %909 = vmatpush1.bf16.msra.mxu0 %v886
        %910 = vmatprep.subr.bf16.mxu0 0
        %911 = vmatpush1.bf16.msra.mxu0 %v887
        %912 = vmatprep.subr.bf16.mxu0 0
        %913 = vmatpush1.bf16.msra.mxu0 0
        %914 = vmatprep.subr.bf16.mxu0 0
        %915 = vmatpush1.bf16.msra.mxu0 0
        %916 = vmatprep.subr.bf16.mxu0 0
        %917 = vmatpush1.bf16.msra.mxu0 0
        %918 = vmatprep.subr.bf16.mxu0 0
        %919 = vmatpush1.bf16.msra.mxu0 0
        %920 = vmatprep.subr.bf16.mxu0 0
        %921 = vmatpush1.bf16.msra.mxu0 0
        %922 = vmatprep.subr.bf16.mxu0 0
        %923 = vmatpush1.bf16.msra.mxu0 0
        %924 = vmatprep.subr.bf16.mxu0 0
        %925 = vmatpush1.bf16.msra.mxu0 0
        %926 = vmatprep.subr.bf16.mxu0 0
        %927 = vmatpush1.bf16.msra.mxu0 0
        %928 = vmatprep.mubr.bf16.mxu0 0
        %929 = vmatmul.mubr.bf16.gmra.mrb[0].mxu0 %v831
        %v930 = vpop.f32.mrb[0].mxu0
        %v931 = vadd.f32 0.0, %v930
        %v932 = vpop.f32.mrb[0].mxu0
        %v933 = vpop.f32.mrb[0].mxu0
        %v934 = vadd.f32 0.0, %v933
        %v935 = vpop.f32.mrb[0].mxu0
        %936 = vdwg.mxu0
        %v937 = vadd.f32 %v829, %v931
        %v938 = vadd.f32 %v830, %v934
        %939 = vst [vmem:[#allocation2 + $0x1] sm:$0xff] %v937
        %940 = vst [vmem:[#allocation2 + $0x9] sm:$0x7f] %v938
        %v941 = vld [vmem:[#allocation2] sm:$0xff]
        %v942 = vld [vmem:[#allocation2 + $0x8] sm:$0x7f]
        %v943 = vld [vmem:[#allocation3] sm:$0xff]
        %s944 = scalar_lea.vmem [#allocation9], 128
        %v945 = vld [vmem:[%s944] sm:$0xf]
        %v946 = vld [vmem:[%s944 + $0x4] sm:$0xf]
        %v947 = vld [vmem:[%s944 + $0x8] sm:$0xf]
        %v948 = vld [vmem:[%s944 + $0xc] sm:$0xf]
        %v949 = vld [vmem:[%s944 + $0x10] sm:$0xf]
        %v950 = vld [vmem:[%s944 + $0x14] sm:$0xf]
        %v951 = vld [vmem:[%s944 + $0x18] sm:$0xf]
        %v952 = vld [vmem:[%s944 + $0x1c] sm:$0xf]
        %v953 = vld [vmem:[%s944 + $0x20] sm:$0xf]
        %v954 = vld [vmem:[%s944 + $0x24] sm:$0xf]
        %v955 = vld [vmem:[%s944 + $0x28] sm:$0xf]
        %v956 = vld [vmem:[%s944 + $0x2c] sm:$0xf]
        %v957 = vld [vmem:[%s944 + $0x30] sm:$0xf]
        %v958 = vld [vmem:[%s944 + $0x34] sm:$0xf]
        %v959 = vld [vmem:[%s944 + $0x38] sm:$0xf]
        %v960 = vld [vmem:[%s944 + $0x3c] sm:$0xf]
        %v962 = vshrl.u32 %v943, 16
        %v964 = vshll.u32 %v943, 16
        %v966 = vrot.slane %v964, 1
        %v967 = vor.u32 %v962, %v966
        %v985 = vunpack.c.l.b16 %v945
        %v986 = vunpack.c.l.b16 %v946
        %v987 = vunpack.c.l.b16 %v947
        %v988 = vunpack.c.l.b16 %v948
        %v989 = vunpack.c.l.b16 %v949
        %v990 = vunpack.c.l.b16 %v950
        %v991 = vunpack.c.l.b16 %v951
        %v992 = vunpack.c.l.b16 %v952
        %v993 = vunpack.c.l.b16 %v953
        %v994 = vunpack.c.l.b16 %v954
        %v995 = vunpack.c.l.b16 %v955
        %v996 = vunpack.c.l.b16 %v956
        %v997 = vunpack.c.l.b16 %v957
        %v998 = vunpack.c.l.b16 %v958
        %v999 = vunpack.c.l.b16 %v959
        %v1000 = vunpack.c.l.b16 %v960
        %v1001 = vpack.c.b16 %v986, %v985
        %v1002 = vpack.c.b16 %v988, %v987
        %v1003 = vpack.c.b16 %v990, %v989
        %v1004 = vpack.c.b16 %v992, %v991
        %v1005 = vpack.c.b16 %v994, %v993
        %v1006 = vpack.c.b16 %v996, %v995
        %v1007 = vpack.c.b16 %v998, %v997
        %v1008 = vpack.c.b16 %v1000, %v999
        %1017 = vmatprep.subr.bf16.mxu0 0
        %1018 = vmatpush1.bf16.msra.mxu0 %v1001
        %1019 = vmatprep.subr.bf16.mxu0 0
        %1020 = vmatpush1.bf16.msra.mxu0 %v1002
        %1021 = vmatprep.subr.bf16.mxu0 0
        %1022 = vmatpush1.bf16.msra.mxu0 %v1003
        %1023 = vmatprep.subr.bf16.mxu0 0
        %1024 = vmatpush1.bf16.msra.mxu0 %v1004
        %1025 = vmatprep.subr.bf16.mxu0 0
        %1026 = vmatpush1.bf16.msra.mxu0 %v1005
        %1027 = vmatprep.subr.bf16.mxu0 0
        %1028 = vmatpush1.bf16.msra.mxu0 %v1006
        %1029 = vmatprep.subr.bf16.mxu0 0
        %1030 = vmatpush1.bf16.msra.mxu0 %v1007
        %1031 = vmatprep.subr.bf16.mxu0 0
        %1032 = vmatpush1.bf16.msra.mxu0 %v1008
        %1033 = vmatprep.subr.bf16.mxu0 0
        %1034 = vmatpush1.bf16.msra.mxu0 0
        %1035 = vmatprep.subr.bf16.mxu0 0
        %1036 = vmatpush1.bf16.msra.mxu0 0
        %1037 = vmatprep.subr.bf16.mxu0 0
        %1038 = vmatpush1.bf16.msra.mxu0 0
        %1039 = vmatprep.subr.bf16.mxu0 0
        %1040 = vmatpush1.bf16.msra.mxu0 0
        %1041 = vmatprep.subr.bf16.mxu0 0
        %1042 = vmatpush1.bf16.msra.mxu0 0
        %1043 = vmatprep.subr.bf16.mxu0 0
        %1044 = vmatpush1.bf16.msra.mxu0 0
        %1045 = vmatprep.subr.bf16.mxu0 0
        %1046 = vmatpush1.bf16.msra.mxu0 0
        %1047 = vmatprep.subr.bf16.mxu0 0
        %1048 = vmatpush1.bf16.msra.mxu0 0
        %1049 = vmatprep.mubr.bf16.mxu0 0
        %1050 = vmatmul.mubr.bf16.gmra.mrb[0].mxu0 %v967
        %v1051 = vpop.f32.mrb[0].mxu0
        %v1052 = vadd.f32 0.0, %v1051
        %v1053 = vpop.f32.mrb[0].mxu0
        %v1054 = vpop.f32.mrb[0].mxu0
        %v1055 = vadd.f32 0.0, %v1054
        %v1056 = vpop.f32.mrb[0].mxu0
        %1057 = vdwg.mxu0
        %v1058 = vadd.f32 %v941, %v1052
        %v1059 = vadd.f32 %v942, %v1055
        %1060 = vst [vmem:[#allocation2] sm:$0xff] %v1058
        %1061 = vst [vmem:[#allocation2 + $0x8] sm:$0x7f] %v1059
        %v1062 = vld [vmem:[#allocation2] sm:$0xff]
        %v1063 = vld [vmem:[#allocation2 + $0x8] sm:$0xff]
        %v1064 = vld [vmem:[%s5] sm:$0x1]
        %v1066 = vlaneseq
        %v1067 = vshrl.u32 %v1066, 7
        %v1068 = vsub.s32 0, %v1067
        %v1069 = vrot.slane %v1064, %v1068
        %v1071 = vmul.f32 %v1062, %v1069
        %v1072 = vmul.f32 %v1063, %v1069
        %v1073 = vld [vmem:[%s6] sm:$0x1]
        %v1075 = vlaneseq
        %v1076 = vshrl.u32 %v1075, 7
        %v1077 = vsub.s32 0, %v1076
        %v1078 = vrot.slane %v1073, %v1077
        %v1080 = vadd.f32 %v1071, %v1078
        %v1081 = vadd.f32 %v1072, %v1078
        %v1082 = vld [vmem:[#allocation10] sm:$0xf]
        %v1083 = vld [vmem:[#allocation10 + $0x4] sm:$0xf]
        %v1084 = vld [vmem:[#allocation10 + $0x8] sm:$0xf]
        %v1085 = vld [vmem:[#allocation10 + $0xc] sm:$0xf]
        %v1086 = vld [vmem:[#allocation10 + $0x10] sm:$0xf]
        %v1087 = vld [vmem:[#allocation10 + $0x14] sm:$0xf]
        %v1088 = vld [vmem:[#allocation10 + $0x18] sm:$0xf]
        %v1089 = vld [vmem:[#allocation10 + $0x1c] sm:$0xf]
        %v1098 = vunpack.c.l.b16 %v1082
        %v1099 = vunpack.c.l.b16 %v1083
        %v1100 = vunpack.c.l.b16 %v1084
        %v1101 = vunpack.c.l.b16 %v1085
        %v1102 = vunpack.c.l.b16 %v1086
        %v1103 = vunpack.c.l.b16 %v1087
        %v1104 = vunpack.c.l.b16 %v1088
        %v1105 = vunpack.c.l.b16 %v1089
        %v1106 = vpack.c.b16 %v1099, %v1098
        %v1107 = vpack.c.b16 %v1101, %v1100
        %v1108 = vpack.c.b16 %v1103, %v1102
        %v1109 = vpack.c.b16 %v1105, %v1104
        %1114 = vmatprep.subr.bf16.mxu0 0
        %1115 = vmatpush1.bf16.msra.mxu0 %v1106
        %1116 = vmatprep.subr.bf16.mxu0 0
        %1117 = vmatpush1.bf16.msra.mxu0 %v1107
        %1118 = vmatprep.subr.bf16.mxu0 0
        %1119 = vmatpush1.bf16.msra.mxu0 %v1108
        %1120 = vmatprep.subr.bf16.mxu0 0
        %1121 = vmatpush1.bf16.msra.mxu0 %v1109
        %1122 = vmatprep.subr.bf16.mxu0 0
        %1123 = vmatpush1.bf16.msra.mxu0 0
        %1124 = vmatprep.subr.bf16.mxu0 0
        %1125 = vmatpush1.bf16.msra.mxu0 0
        %1126 = vmatprep.subr.bf16.mxu0 0
        %1127 = vmatpush1.bf16.msra.mxu0 0
        %1128 = vmatprep.subr.bf16.mxu0 0
        %1129 = vmatpush1.bf16.msra.mxu0 0
        %1130 = vmatprep.subr.bf16.mxu0 0
        %1131 = vmatpush1.bf16.msra.mxu0 0
        %1132 = vmatprep.subr.bf16.mxu0 0
        %1133 = vmatpush1.bf16.msra.mxu0 0
        %1134 = vmatprep.subr.bf16.mxu0 0
        %1135 = vmatpush1.bf16.msra.mxu0 0
        %1136 = vmatprep.subr.bf16.mxu0 0
        %1137 = vmatpush1.bf16.msra.mxu0 0
        %1138 = vmatprep.subr.bf16.mxu0 0
        %1139 = vmatpush1.bf16.msra.mxu0 0
        %1140 = vmatprep.subr.bf16.mxu0 0
        %1141 = vmatpush1.bf16.msra.mxu0 0
        %1142 = vmatprep.subr.bf16.mxu0 0
        %1143 = vmatpush1.bf16.msra.mxu0 0
        %1144 = vmatprep.subr.bf16.mxu0 0
        %1145 = vmatpush1.bf16.msra.mxu0 0
        %1146 = vmatprep.mubr.bf16.mxu0 0
        %1147 = vmatmul.mubr.bf16.gmra.mrb[0].mxu0 %v465
        %v1148 = vpop.f32.mrb[0].mxu0
        %v1149 = vadd.f32 0.0, %v1148
        %v1150 = vpop.f32.mrb[0].mxu0
        %v1151 = vpop.f32.mrb[0].mxu0
        %v1152 = vadd.f32 0.0, %v1151
        %v1153 = vpop.f32.mrb[0].mxu0
        %1154 = vdwg.mxu0
        %v1155 = vld [vmem:[%s8] sm:$0x1]
        %v1157 = vlaneseq
        %v1158 = vshrl.u32 %v1157, 7
        %v1159 = vsub.s32 0, %v1158
        %v1160 = vrot.slane %v1155, %v1159
        %v1162 = vmul.f32 %v1149, %v1160
        %v1163 = vmul.f32 %v1152, %v1160
        %v1164 = vld [vmem:[%s9] sm:$0x1]
        %v1166 = vlaneseq
        %v1167 = vshrl.u32 %v1166, 7
        %v1168 = vsub.s32 0, %v1167
        %v1169 = vrot.slane %v1164, %v1168
        %v1171 = vadd.f32 %v1162, %v1169
        %v1172 = vadd.f32 %v1163, %v1169
        %v1173 = vadd.f32 %v1080, %v1171
        %v1174 = vadd.f32 %v1081, %v1172
        %v1175 = vmax.f32 %v1173, 0.0
        %v1176 = vmax.f32 %v1174, 0.0
        %1177 = vst [vmem:[%s421] sm:$0xff] %v1175
        %1178 = vst [vmem:[%s421 + $0x8] sm:$0xff] %v1176
        %s1179 = sand.u32 %s252, 1
        %s1180 = scalar_lea.sflag [#allocation6], %s1179
        %s1181 = sand.u32 %s252, 1
        %s1182 = smul.addr %s1181, 16
        %s1183 = scalar_lea.vmem [#allocation12], %s1182
        // Predicated region
        $region77: #{tpu_custom_call.1} parent=59 // pred_check
          %p1184 = pneg %p262
        $region78: #{tpu_custom_call.1} parent=59 // pred_check_branch
          %1186 = sbr.rel (%p1184) target = $region80
        $region79: #{tpu_custom_call.1} parent=59 // pred_region
          %s1188 = ssub.s32 256, 256
          %1189 = vsyncadd %s1180, %s1188
          %s1190 = smul.addr %s29, 2
          %s1191 = smul.addr %s1190, 128
          %s1192 = scalar_lea.hbm %s10, %s1191
          %s1193 = sshll.u32 %s1183, 4
          %s1194 = int_to_ptr.vmem [resolvable:$true] %s1193
          %1199 = dma.vmem_to_hbm [thread:$0]  %s1194, 256, %s1192, %s1180, 128, 128, 8
        $region80: #{tpu_custom_call.1} parent=59 // pred_fallthru
          _
      $region60: #{tpu_custom_call.1} parent=5 // pred_fallthru
        _
      %p1200 = scmp.le.s32.totalorder 2, %s24
      // Predicated region
      $region81: #{tpu_custom_call.1} parent=5 // pred_check
        %p1201 = pneg %p1200
      $region82: #{tpu_custom_call.1} parent=5 // pred_check_branch
        %1203 = sbr.rel (%p1201) target = $region84
      $region83: #{tpu_custom_call.1} parent=5 // pred_region
        %s1204 = ssub.s32 %s24, 2
        // Predicated region
        $region85: #{tpu_custom_call.1} parent=83 // pred_check
          %p1205 = pneg %p268
        $region86: #{tpu_custom_call.1} parent=83 // pred_check_branch
          %1207 = sbr.rel (%p1205) target = $region88
        $region87: #{tpu_custom_call.1} parent=83 // pred_region
          %s1208 = sand.u32 %s253, 1
          %s1209 = scalar_lea.sflag [#allocation6], %s1208
          %s1210 = sand.u32 %s253, 1
          %s1211 = smul.addr %s1210, 16
          %s1212 = scalar_lea.vmem [#allocation12], %s1211
          %1213 = dma.done %s1209, 256
        $region88: #{tpu_custom_call.1} parent=83 // pred_fallthru
          _
      $region84: #{tpu_custom_call.1} parent=5 // pred_fallthru
        _
    $region6: #{tpu_custom_call.1} parent=1 // loop_footer
      %s28 = sadd.s32 1, %s24
    $region7: #{tpu_custom_call.1} parent=1 // loop_footer_branch
      %23 = sbr.rel target = $region3
    $region8: #{tpu_custom_call.1} parent=1 // loop_exit
      _
    %1214 = vsyncpa [#allocation5], 1
    %s1215 = scalar_lea.sflag [#allocation5], 1
    %1216 = vsyncpa %s1215, 1
    %1217 = vsyncpa [#allocation8], 1
    %1218 = vsyncpa [#allocation11], 1
    %1219 = vsyncpa [#allocation6], 1
    %s1220 = scalar_lea.sflag [#allocation6], 1
    %1221 = vsyncpa %s1220, 1

</llo_original>
